<compile_context>
chip_gen: v5e
topology: v5e:2x2
jax: 0.10.0
libtpu: 0.0.40
codegen_flags: <defaults>
</compile_context>

<pallas_src>
import numpy as np
import jax
import jax.numpy as jnp
from jax import lax
from jax.experimental import pallas as pl
from jax.experimental.pallas import tpu as pltpu

TWO_PI = float(2.0 * np.pi)
INV_TWO_PI = float(1.0 / (2.0 * np.pi))


def _kuramoto_kernel(x_ref, wi_wT_ref, bias_ref, whT_ref,
                     states_ref, final_ref, state_sc, inp_sc):
    # Block shapes:
    #   x_ref      : (t_chunk*B, n_inp)   flattened time-major input chunk
    #   wi_wT_ref  : (n_inp, H_pad)       resident (constant index_map)
    #   bias_ref   : (1, H_pad)           Wi bias + omega, resident
    #   whT_ref    : (H_pad, H_pad)       resident
    #   states_ref : (t_chunk, B, H_pad)  per-chunk states output
    #   final_ref  : (B, H_pad)           final state (written on last chunk)
    #   state_sc   : (B, H_pad)           carried phase state (VMEM scratch)
    #   inp_sc     : (t_chunk, B, H_pad)  hoisted input projections (VMEM scratch)
    t_chunk, b, _ = states_ref.shape
    c = pl.program_id(0)
    n_chunks = pl.num_programs(0)

    # Initialize the carried state on the first time chunk (zeros, like the module).
    @pl.when(c == 0)
    def _():
        state_sc[...] = jnp.zeros_like(state_sc)

    # Hoisted, state-independent input projection: ONE GEMM per chunk (off the
    # serial recurrence), bias+omega added once per chunk.
    inp_flat = jnp.dot(x_ref[...], wi_wT_ref[...],
                       preferred_element_type=jnp.float32) + bias_ref[...]
    for t in range(t_chunk):                      # static; off the serial chain
        inp_sc[t] = inp_flat[t * b:(t + 1) * b, :]

    whT = whT_ref[...]                            # (H_pad, H_pad)
    two_pi = jnp.float32(TWO_PI)
    inv_two_pi = jnp.float32(INV_TWO_PI)

    def step(t, state):
        s_sin = jnp.sin(state)                    # (B, H_pad)
        s_cos = jnp.cos(state)                    # (B, H_pad)
        # coupling[b,i] = sum_j Wh[i,j] * sin(s[b,i] - s[b,j])
        #              = sin(s_i)*(cos(s) @ Wh.T)[b,i] - cos(s_i)*(sin(s) @ Wh.T)[b,i]
        proj_cos = jnp.dot(s_cos, whT, preferred_element_type=jnp.float32)
        proj_sin = jnp.dot(s_sin, whT, preferred_element_type=jnp.float32)
        coupling = s_sin * proj_cos - s_cos * proj_sin

        a = coupling + inp_sc[t] + state
        # torch.remainder(a, 2*pi) for a positive constant divisor, without a
        # per-element divide on the serial critical path:
        new_state = a - two_pi * jnp.floor(a * inv_two_pi)
        states_ref[t] = new_state
        return new_state

    state = lax.fori_loop(0, t_chunk, step, state_sc[...], unroll=True)
    state_sc[...] = state

    @pl.when(c == n_chunks - 1)
    def _():
        final_ref[...] = state


def kuramoto_forward(x, wi_w, wi_b, wh, omega, wr_w, wr_b, *, t_chunk=None):
    """x: (T, B, n_inp). Returns (output (B, n_out), states (T, B, n_hid))."""
    T, B, n_inp = x.shape
    n_hid = wh.shape[0]

    # ---- layout plumbing (outside the kernel) ----
    # Pre-transpose weights, fuse Wi bias + omega, zero-pad the hidden dim to a
    # lane-dense multiple of 128 (padded lanes stay exactly 0 through the
    # recurrence because the padded Wh / Wi columns and bias entries are zero).
    h_pad = ((n_hid + 127) // 128) * 128
    wi_wT = jnp.zeros((n_inp, h_pad), jnp.float32).at[:, :n_hid].set(wi_w.T)
    bias = jnp.zeros((1, h_pad), jnp.float32).at[:, :n_hid].set(wi_b + omega)
    whT = jnp.zeros((h_pad, h_pad), jnp.float32).at[:n_hid, :n_hid].set(wh.T)
    # Flatten (T, B, n_inp) -> (T*B, n_inp) so the per-chunk input projection is
    # a single 2-D GEMM with no in-kernel reshape.
    x_flat = x.astype(jnp.float32).reshape(T * B, n_inp)

    # Time chunk: bounded unroll + bounded VMEM footprint.  Keep the block's
    # second-to-last dim (t_chunk*B) sublane-friendly (multiple of 8) unless we
    # take the whole time axis in one block.
    if t_chunk is None:
        t_chunk = T
        for cand in (16, 8, 4, 2, 1):
            if T % cand == 0 and (cand * B) % 8 == 0:
                t_chunk = cand
                break
    assert T % t_chunk == 0, "t_chunk must divide T"
    assert (t_chunk * B) % 8 == 0 or t_chunk == T, "t_chunk*B must be a multiple of 8"
    n_chunks = T // t_chunk

    states_pad, final_pad = pl.pallas_call(
        _kuramoto_kernel,
        out_shape=(jax.ShapeDtypeStruct((T, B, h_pad), jnp.float32),
                   jax.ShapeDtypeStruct((B, h_pad), jnp.float32)),
        grid_spec=pltpu.PrefetchScalarGridSpec(
            num_scalar_prefetch=0,
            grid=(n_chunks,),
            in_specs=[
                pl.BlockSpec((t_chunk * B, n_inp), lambda c: (c, 0)),   # x chunk (streams)
                pl.BlockSpec((n_inp, h_pad), lambda c: (0, 0)),         # Wi^T (resident)
                pl.BlockSpec((1, h_pad), lambda c: (0, 0)),             # bias+omega (resident)
                pl.BlockSpec((h_pad, h_pad), lambda c: (0, 0)),         # Wh^T (resident)
            ],
            out_specs=[
                pl.BlockSpec((t_chunk, B, h_pad), lambda c: (c, 0, 0)),  # states chunk
                pl.BlockSpec((B, h_pad), lambda c: (0, 0)),              # final state
            ],
            scratch_shapes=[
                pltpu.VMEM((B, h_pad), jnp.float32),            # carried phase state
                pltpu.VMEM((t_chunk, B, h_pad), jnp.float32),   # hoisted input projections
            ]),
        compiler_params=pltpu.CompilerParams(
            dimension_semantics=("arbitrary",)),   # time recurrence is sequential
    )(x_flat, wi_wT, bias, whT)

    states = states_pad[:, :, :n_hid]
    final_state = final_pad[:, :n_hid]
    # Readout is a tiny one-shot GEMM; do it in plain JAX on the final state.
    output = jnp.dot(final_state, wr_w.T, precision=lax.Precision.HIGHEST) + wr_b
    return output, states


def kuramoto_reference(x, wi_w, wi_b, wh, omega, wr_w, wr_b):
    """Pure-JAX reference mirroring the PyTorch forward (direct pairwise form)."""
    T, B, _ = x.shape
    n_hid = wh.shape[0]
    hp = lax.Precision.HIGHEST
    state = jnp.zeros((B, n_hid), jnp.float32)
    states = []
    for t in range(T):
        diff = state[:, :, None] - state[:, None, :]
        coupling = jnp.sum(wh[None] * jnp.sin(diff), axis=2)
        inp = jnp.dot(x[t], wi_w.T, precision=hp) + wi_b[0]
        state = jnp.mod(coupling + inp + omega[0] + state, TWO_PI)
        states.append(state)
    out = jnp.dot(state, wr_w.T, precision=hp) + wr_b[0]
    return out, jnp.stack(states, axis=0)


def _circular_abs_diff(a, b):
    """Phase-aware absolute difference (guards against 2*pi wrap near the mod boundary)."""
    d = np.abs(np.asarray(a) - np.asarray(b))
    return np.minimum(d, TWO_PI - d)


if __name__ == "__main__":
    # Small shapes consistent with the module: seq T=8, batch B=2, n_inp=16,
    # n_hid=32, n_out=8.
    T, B, n_inp, n_hid, n_out = 8, 2, 16, 32, 8

    key = jax.random.PRNGKey(0)
    kx, kwi, kbi, kwh, kom, kwr, kbr = jax.random.split(key, 7)

    x = jax.random.normal(kx, (T, B, n_inp), jnp.float32)

    # Deterministic parameter init matching the __init__ shapes:
    #   Wi: Linear(n_inp, n_hid, bias=True); Wh: (n_hid, n_hid) ~ U[0,1) / n_hid;
    #   omega (freq): (n_hid,); readout: Linear(n_hid, n_out).
    wi_w = jax.random.uniform(kwi, (n_hid, n_inp), jnp.float32,
                              -1.0 / np.sqrt(n_inp), 1.0 / np.sqrt(n_inp))
    wi_b = jax.random.uniform(kbi, (1, n_hid), jnp.float32,
                              -1.0 / np.sqrt(n_inp), 1.0 / np.sqrt(n_inp))
    wh = jax.random.uniform(kwh, (n_hid, n_hid), jnp.float32, 0.0, 1.0) / n_hid
    omega = jax.random.uniform(kom, (1, n_hid), jnp.float32, 0.0, 1.0)
    wr_w = jax.random.uniform(kwr, (n_out, n_hid), jnp.float32,
                              -1.0 / np.sqrt(n_hid), 1.0 / np.sqrt(n_hid))
    wr_b = jax.random.uniform(kbr, (1, n_out), jnp.float32,
                              -1.0 / np.sqrt(n_hid), 1.0 / np.sqrt(n_hid))

    # Use t_chunk=4 so the test exercises the multi-chunk grid path (2 chunks):
    # carried-state handoff between chunks and the last-chunk final-state write.
    out, states = kuramoto_forward(x, wi_w, wi_b, wh, omega, wr_w, wr_b, t_chunk=4)
    out = jax.block_until_ready(out)
    states = jax.block_until_ready(states)

    ref_out, ref_states = kuramoto_reference(x, wi_w, wi_b, wh, omega, wr_w, wr_b)
    assert out.shape == (B, n_out) and states.shape == (T, B, n_hid)
    # Kernel uses the sin-difference identity on the MXU (default matmul precision)
    # vs. the direct pairwise reference at HIGHEST precision, so allow slightly
    # looser tolerances and compare phases circularly.
    np.testing.assert_allclose(np.asarray(out), np.asarray(ref_out),
                               rtol=1e-4, atol=1e-4)
    assert float(np.max(_circular_abs_diff(states, ref_states))) < 1e-4

    print("KERNEL_OK")
</pallas_src>

<mosaic_0001>
module attributes {stable_mosaic.version = 11 : i64} {
  func.func @_kuramoto_kernel(%arg0: i32, %arg1: memref<8x16xf32, #tpu.memory_space<vmem>>, %arg2: memref<16x128xf32, #tpu.memory_space<vmem>>, %arg3: memref<1x128xf32, #tpu.memory_space<vmem>>, %arg4: memref<128x128xf32, #tpu.memory_space<vmem>>, %arg5: memref<4x2x128xf32, #tpu.memory_space<vmem>>, %arg6: memref<2x128xf32, #tpu.memory_space<vmem>>, %arg7: memref<2x128xf32, #tpu.memory_space<vmem>>, %arg8: memref<4x2x128xf32, #tpu.memory_space<vmem>>) attributes {dimension_semantics = [#tpu.dimension_semantics<arbitrary>], iteration_bounds = array<i64: 2>, scalar_prefetch = 0 : i64, scratch_operands = 2 : i64, tpu.core_type = #tpu.core_type<tc>, window_params = [{transform_indices = @transform_0, window_bounds = array<i64: 8, 16>}, {pipeline_mode = #tpu.pipeline_mode<synchronous>, transform_indices = @transform_1, window_bounds = array<i64: 16, 128>}, {pipeline_mode = #tpu.pipeline_mode<synchronous>, transform_indices = @transform_2, window_bounds = array<i64: 1, 128>}, {pipeline_mode = #tpu.pipeline_mode<synchronous>, transform_indices = @transform_3, window_bounds = array<i64: 128, 128>}, {transform_indices = @transform_4, window_bounds = array<i64: 4, 2, 128>}, {pipeline_mode = #tpu.pipeline_mode<synchronous>, transform_indices = @transform_5, window_bounds = array<i64: 2, 128>}]} {
    %c0_i32 = arith.constant 0 : i32
    %0 = arith.cmpi eq, %arg0, %c0_i32 : i32
    %1 = arith.extui %0 : i1 to i32
    %c0_i32_0 = arith.constant 0 : i32
    %2 = arith.cmpi ne, %1, %c0_i32_0 : i32
    scf.if %2 {
      %cst_50 = arith.constant 0.000000e+00 : f32
      %119 = vector.broadcast %cst_50 : f32 to vector<2x128xf32>
      %c0_51 = arith.constant 0 : index
      %c0_52 = arith.constant 0 : index
      %120 = vector.load %arg7[%c0_51, %c0_52] : memref<2x128xf32, #tpu.memory_space<vmem>>, vector<2x128xf32>
      tpu.vector_store %arg7[%c0_51, %c0_52], %119 {strides = array<i32>} : memref<2x128xf32, #tpu.memory_space<vmem>>, vector<2x128xf32>,
    } else {
    }
    %c0 = arith.constant 0 : index
    %c0_1 = arith.constant 0 : index
    %3 = vector.load %arg1[%c0, %c0_1] : memref<8x16xf32, #tpu.memory_space<vmem>>, vector<8x16xf32>
    %c0_2 = arith.constant 0 : index
    %c0_3 = arith.constant 0 : index
    %4 = vector.load %arg2[%c0_2, %c0_3] : memref<16x128xf32, #tpu.memory_space<vmem>>, vector<16x128xf32>
    %cst = arith.constant dense<0.000000e+00> : vector<8x128xf32>
    %5 = tpu.matmul %3, %4, %cst {dimension_numbers = #tpu.dot_dimension_numbers<[1], [0], [0], [1], [0, 0, 1, 1], [], []>} : vector<8x16xf32>, vector<16x128xf32>, vector<8x128xf32> -> vector<8x128xf32>
    %c0_4 = arith.constant 0 : index
    %c0_5 = arith.constant 0 : index
    %6 = vector.load %arg3[%c0_4, %c0_5] : memref<1x128xf32, #tpu.memory_space<vmem>>, vector<1x128xf32>
    %7 = vector.broadcast %6 : vector<1x128xf32> to vector<8x128xf32>
    %8 = arith.addf %5, %7 : vector<8x128xf32>
    %9 = vector.extract_strided_slice %8 {offsets = [0, 0], sizes = [2, 128], strides = [1, 1]} : vector<8x128xf32> to vector<2x128xf32>
    %c0_6 = arith.constant 0 : index
    %c0_7 = arith.constant 0 : index
    %c0_8 = arith.constant 0 : index
    %10 = vector.load %arg8[%c0_6, %c0_7, %c0_8] : memref<4x2x128xf32, #tpu.memory_space<vmem>>, vector<1x2x128xf32>
    %11 = vector.shape_cast %10 : vector<1x2x128xf32> to vector<2x128xf32>
    %12 = vector.shape_cast %9 : vector<2x128xf32> to vector<1x2x128xf32>
    tpu.vector_store %arg8[%c0_6, %c0_7, %c0_8], %12 {strides = array<i32>} : memref<4x2x128xf32, #tpu.memory_space<vmem>>, vector<1x2x128xf32>,
    %13 = vector.extract_strided_slice %8 {offsets = [2, 0], sizes = [2, 128], strides = [1, 1]} : vector<8x128xf32> to vector<2x128xf32>
    %c1 = arith.constant 1 : index
    %c0_9 = arith.constant 0 : index
    %c0_10 = arith.constant 0 : index
    %14 = vector.load %arg8[%c1, %c0_9, %c0_10] : memref<4x2x128xf32, #tpu.memory_space<vmem>>, vector<1x2x128xf32>
    %15 = vector.shape_cast %14 : vector<1x2x128xf32> to vector<2x128xf32>
    %16 = vector.shape_cast %13 : vector<2x128xf32> to vector<1x2x128xf32>
    tpu.vector_store %arg8[%c1, %c0_9, %c0_10], %16 {strides = array<i32>} : memref<4x2x128xf32, #tpu.memory_space<vmem>>, vector<1x2x128xf32>,
    %17 = vector.extract_strided_slice %8 {offsets = [4, 0], sizes = [2, 128], strides = [1, 1]} : vector<8x128xf32> to vector<2x128xf32>
    %c2 = arith.constant 2 : index
    %c0_11 = arith.constant 0 : index
    %c0_12 = arith.constant 0 : index
    %18 = vector.load %arg8[%c2, %c0_11, %c0_12] : memref<4x2x128xf32, #tpu.memory_space<vmem>>, vector<1x2x128xf32>
    %19 = vector.shape_cast %18 : vector<1x2x128xf32> to vector<2x128xf32>
    %20 = vector.shape_cast %17 : vector<2x128xf32> to vector<1x2x128xf32>
    tpu.vector_store %arg8[%c2, %c0_11, %c0_12], %20 {strides = array<i32>} : memref<4x2x128xf32, #tpu.memory_space<vmem>>, vector<1x2x128xf32>,
    %21 = vector.extract_strided_slice %8 {offsets = [6, 0], sizes = [2, 128], strides = [1, 1]} : vector<8x128xf32> to vector<2x128xf32>
    %c3 = arith.constant 3 : index
    %c0_13 = arith.constant 0 : index
    %c0_14 = arith.constant 0 : index
    %22 = vector.load %arg8[%c3, %c0_13, %c0_14] : memref<4x2x128xf32, #tpu.memory_space<vmem>>, vector<1x2x128xf32>
    %23 = vector.shape_cast %22 : vector<1x2x128xf32> to vector<2x128xf32>
    %24 = vector.shape_cast %21 : vector<2x128xf32> to vector<1x2x128xf32>
    tpu.vector_store %arg8[%c3, %c0_13, %c0_14], %24 {strides = array<i32>} : memref<4x2x128xf32, #tpu.memory_space<vmem>>, vector<1x2x128xf32>,
    %c0_15 = arith.constant 0 : index
    %c0_16 = arith.constant 0 : index
    %25 = vector.load %arg4[%c0_15, %c0_16] : memref<128x128xf32, #tpu.memory_space<vmem>>, vector<128x128xf32>
    %c0_17 = arith.constant 0 : index
    %c0_18 = arith.constant 0 : index
    %26 = vector.load %arg7[%c0_17, %c0_18] : memref<2x128xf32, #tpu.memory_space<vmem>>, vector<2x128xf32>
    %cst_19 = arith.constant 0.159154937 : f32
    %cst_20 = arith.constant 6.28318548 : f32
    %c0_i32_21 = arith.constant 0 : i32
    %27 = math.sin %26 : vector<2x128xf32>
    %28 = math.cos %26 : vector<2x128xf32>
    %cst_22 = arith.constant dense<0.000000e+00> : vector<2x128xf32>
    %29 = tpu.matmul %28, %25, %cst_22 {dimension_numbers = #tpu.dot_dimension_numbers<[1], [0], [0], [1], [0, 0, 1, 1], [], []>} : vector<2x128xf32>, vector<128x128xf32>, vector<2x128xf32> -> vector<2x128xf32>
    %cst_23 = arith.constant dense<0.000000e+00> : vector<2x128xf32>
    %30 = tpu.matmul %27, %25, %cst_23 {dimension_numbers = #tpu.dot_dimension_numbers<[1], [0], [0], [1], [0, 0, 1, 1], [], []>} : vector<2x128xf32>, vector<128x128xf32>, vector<2x128xf32> -> vector<2x128xf32>
    %31 = arith.mulf %27, %29 : vector<2x128xf32>
    %32 = arith.mulf %28, %30 : vector<2x128xf32>
    %33 = arith.subf %31, %32 : vector<2x128xf32>
    %34 = arith.index_cast %c0_i32_21 : i32 to index
    %c0_24 = arith.constant 0 : index
    %c0_25 = arith.constant 0 : index
    %35 = vector.load %arg8[%34, %c0_24, %c0_25] : memref<4x2x128xf32, #tpu.memory_space<vmem>>, vector<1x2x128xf32>
    %36 = vector.shape_cast %35 : vector<1x2x128xf32> to vector<2x128xf32>
    %37 = arith.addf %33, %36 : vector<2x128xf32>
    %38 = arith.addf %37, %26 : vector<2x128xf32>
    %39 = vector.broadcast %cst_19 : f32 to vector<2x128xf32>
    %40 = arith.mulf %38, %39 : vector<2x128xf32>
    %41 = math.floor %40 : vector<2x128xf32>
    %42 = vector.broadcast %cst_20 : f32 to vector<2x128xf32>
    %43 = arith.mulf %42, %41 : vector<2x128xf32>
    %44 = arith.subf %38, %43 : vector<2x128xf32>
    %45 = arith.index_cast %c0_i32_21 : i32 to index
    %c0_26 = arith.constant 0 : index
    %c0_27 = arith.constant 0 : index
    %46 = vector.load %arg5[%45, %c0_26, %c0_27] : memref<4x2x128xf32, #tpu.memory_space<vmem>>, vector<1x2x128xf32>
    %47 = vector.shape_cast %46 : vector<1x2x128xf32> to vector<2x128xf32>
    %48 = vector.shape_cast %44 : vector<2x128xf32> to vector<1x2x128xf32>
    tpu.vector_store %arg5[%45, %c0_26, %c0_27], %48 {strides = array<i32>} : memref<4x2x128xf32, #tpu.memory_space<vmem>>, vector<1x2x128xf32>,
    %c1_i32 = arith.constant 1 : i32
    %49 = math.sin %44 : vector<2x128xf32>
    %50 = math.cos %44 : vector<2x128xf32>
    %cst_28 = arith.constant dense<0.000000e+00> : vector<2x128xf32>
    %51 = tpu.matmul %50, %25, %cst_28 {dimension_numbers = #tpu.dot_dimension_numbers<[1], [0], [0], [1], [0, 0, 1, 1], [], []>} : vector<2x128xf32>, vector<128x128xf32>, vector<2x128xf32> -> vector<2x128xf32>
    %cst_29 = arith.constant dense<0.000000e+00> : vector<2x128xf32>
    %52 = tpu.matmul %49, %25, %cst_29 {dimension_numbers = #tpu.dot_dimension_numbers<[1], [0], [0], [1], [0, 0, 1, 1], [], []>} : vector<2x128xf32>, vector<128x128xf32>, vector<2x128xf32> -> vector<2x128xf32>
    %53 = arith.mulf %49, %51 : vector<2x128xf32>
    %54 = arith.mulf %50, %52 : vector<2x128xf32>
    %55 = arith.subf %53, %54 : vector<2x128xf32>
    %56 = arith.index_cast %c1_i32 : i32 to index
    %c0_30 = arith.constant 0 : index
    %c0_31 = arith.constant 0 : index
    %57 = vector.load %arg8[%56, %c0_30, %c0_31] : memref<4x2x128xf32, #tpu.memory_space<vmem>>, vector<1x2x128xf32>
    %58 = vector.shape_cast %57 : vector<1x2x128xf32> to vector<2x128xf32>
    %59 = arith.addf %55, %58 : vector<2x128xf32>
    %60 = arith.addf %59, %44 : vector<2x128xf32>
    %61 = vector.broadcast %cst_19 : f32 to vector<2x128xf32>
    %62 = arith.mulf %60, %61 : vector<2x128xf32>
    %63 = math.floor %62 : vector<2x128xf32>
    %64 = vector.broadcast %cst_20 : f32 to vector<2x128xf32>
    %65 = arith.mulf %64, %63 : vector<2x128xf32>
    %66 = arith.subf %60, %65 : vector<2x128xf32>
    %67 = arith.index_cast %c1_i32 : i32 to index
    %c0_32 = arith.constant 0 : index
    %c0_33 = arith.constant 0 : index
    %68 = vector.load %arg5[%67, %c0_32, %c0_33] : memref<4x2x128xf32, #tpu.memory_space<vmem>>, vector<1x2x128xf32>
    %69 = vector.shape_cast %68 : vector<1x2x128xf32> to vector<2x128xf32>
    %70 = vector.shape_cast %66 : vector<2x128xf32> to vector<1x2x128xf32>
    tpu.vector_store %arg5[%67, %c0_32, %c0_33], %70 {strides = array<i32>} : memref<4x2x128xf32, #tpu.memory_space<vmem>>, vector<1x2x128xf32>,
    %c2_i32 = arith.constant 2 : i32
    %71 = math.sin %66 : vector<2x128xf32>
    %72 = math.cos %66 : vector<2x128xf32>
    %cst_34 = arith.constant dense<0.000000e+00> : vector<2x128xf32>
    %73 = tpu.matmul %72, %25, %cst_34 {dimension_numbers = #tpu.dot_dimension_numbers<[1], [0], [0], [1], [0, 0, 1, 1], [], []>} : vector<2x128xf32>, vector<128x128xf32>, vector<2x128xf32> -> vector<2x128xf32>
    %cst_35 = arith.constant dense<0.000000e+00> : vector<2x128xf32>
    %74 = tpu.matmul %71, %25, %cst_35 {dimension_numbers = #tpu.dot_dimension_numbers<[1], [0], [0], [1], [0, 0, 1, 1], [], []>} : vector<2x128xf32>, vector<128x128xf32>, vector<2x128xf32> -> vector<2x128xf32>
    %75 = arith.mulf %71, %73 : vector<2x128xf32>
    %76 = arith.mulf %72, %74 : vector<2x128xf32>
    %77 = arith.subf %75, %76 : vector<2x128xf32>
    %78 = arith.index_cast %c2_i32 : i32 to index
    %c0_36 = arith.constant 0 : index
    %c0_37 = arith.constant 0 : index
    %79 = vector.load %arg8[%78, %c0_36, %c0_37] : memref<4x2x128xf32, #tpu.memory_space<vmem>>, vector<1x2x128xf32>
    %80 = vector.shape_cast %79 : vector<1x2x128xf32> to vector<2x128xf32>
    %81 = arith.addf %77, %80 : vector<2x128xf32>
    %82 = arith.addf %81, %66 : vector<2x128xf32>
    %83 = vector.broadcast %cst_19 : f32 to vector<2x128xf32>
    %84 = arith.mulf %82, %83 : vector<2x128xf32>
    %85 = math.floor %84 : vector<2x128xf32>
    %86 = vector.broadcast %cst_20 : f32 to vector<2x128xf32>
    %87 = arith.mulf %86, %85 : vector<2x128xf32>
    %88 = arith.subf %82, %87 : vector<2x128xf32>
    %89 = arith.index_cast %c2_i32 : i32 to index
    %c0_38 = arith.constant 0 : index
    %c0_39 = arith.constant 0 : index
    %90 = vector.load %arg5[%89, %c0_38, %c0_39] : memref<4x2x128xf32, #tpu.memory_space<vmem>>, vector<1x2x128xf32>
    %91 = vector.shape_cast %90 : vector<1x2x128xf32> to vector<2x128xf32>
    %92 = vector.shape_cast %88 : vector<2x128xf32> to vector<1x2x128xf32>
    tpu.vector_store %arg5[%89, %c0_38, %c0_39], %92 {strides = array<i32>} : memref<4x2x128xf32, #tpu.memory_space<vmem>>, vector<1x2x128xf32>,
    %c3_i32 = arith.constant 3 : i32
    %93 = math.sin %88 : vector<2x128xf32>
    %94 = math.cos %88 : vector<2x128xf32>
    %cst_40 = arith.constant dense<0.000000e+00> : vector<2x128xf32>
    %95 = tpu.matmul %94, %25, %cst_40 {dimension_numbers = #tpu.dot_dimension_numbers<[1], [0], [0], [1], [0, 0, 1, 1], [], []>} : vector<2x128xf32>, vector<128x128xf32>, vector<2x128xf32> -> vector<2x128xf32>
    %cst_41 = arith.constant dense<0.000000e+00> : vector<2x128xf32>
    %96 = tpu.matmul %93, %25, %cst_41 {dimension_numbers = #tpu.dot_dimension_numbers<[1], [0], [0], [1], [0, 0, 1, 1], [], []>} : vector<2x128xf32>, vector<128x128xf32>, vector<2x128xf32> -> vector<2x128xf32>
    %97 = arith.mulf %93, %95 : vector<2x128xf32>
    %98 = arith.mulf %94, %96 : vector<2x128xf32>
    %99 = arith.subf %97, %98 : vector<2x128xf32>
    %100 = arith.index_cast %c3_i32 : i32 to index
    %c0_42 = arith.constant 0 : index
    %c0_43 = arith.constant 0 : index
    %101 = vector.load %arg8[%100, %c0_42, %c0_43] : memref<4x2x128xf32, #tpu.memory_space<vmem>>, vector<1x2x128xf32>
    %102 = vector.shape_cast %101 : vector<1x2x128xf32> to vector<2x128xf32>
    %103 = arith.addf %99, %102 : vector<2x128xf32>
    %104 = arith.addf %103, %88 : vector<2x128xf32>
    %105 = vector.broadcast %cst_19 : f32 to vector<2x128xf32>
    %106 = arith.mulf %104, %105 : vector<2x128xf32>
    %107 = math.floor %106 : vector<2x128xf32>
    %108 = vector.broadcast %cst_20 : f32 to vector<2x128xf32>
    %109 = arith.mulf %108, %107 : vector<2x128xf32>
    %110 = arith.subf %104, %109 : vector<2x128xf32>
    %111 = arith.index_cast %c3_i32 : i32 to index
    %c0_44 = arith.constant 0 : index
    %c0_45 = arith.constant 0 : index
    %112 = vector.load %arg5[%111, %c0_44, %c0_45] : memref<4x2x128xf32, #tpu.memory_space<vmem>>, vector<1x2x128xf32>
    %113 = vector.shape_cast %112 : vector<1x2x128xf32> to vector<2x128xf32>
    %114 = vector.shape_cast %110 : vector<2x128xf32> to vector<1x2x128xf32>
    tpu.vector_store %arg5[%111, %c0_44, %c0_45], %114 {strides = array<i32>} : memref<4x2x128xf32, #tpu.memory_space<vmem>>, vector<1x2x128xf32>,
    %c4_i32 = arith.constant 4 : i32
    %c0_46 = arith.constant 0 : index
    %c0_47 = arith.constant 0 : index
    %115 = vector.load %arg7[%c0_46, %c0_47] : memref<2x128xf32, #tpu.memory_space<vmem>>, vector<2x128xf32>
    tpu.vector_store %arg7[%c0_46, %c0_47], %110 {strides = array<i32>} : memref<2x128xf32, #tpu.memory_space<vmem>>, vector<2x128xf32>,
    %c1_i32_48 = arith.constant 1 : i32
    %116 = arith.cmpi eq, %arg0, %c1_i32_48 : i32
    %117 = arith.extui %116 : i1 to i32
    %c0_i32_49 = arith.constant 0 : i32
    %118 = arith.cmpi ne, %117, %c0_i32_49 : i32
    scf.if %118 {
      %c0_50 = arith.constant 0 : index
      %c0_51 = arith.constant 0 : index
      %119 = vector.load %arg6[%c0_50, %c0_51] : memref<2x128xf32, #tpu.memory_space<vmem>>, vector<2x128xf32>
      tpu.vector_store %arg6[%c0_50, %c0_51], %110 {strides = array<i32>} : memref<2x128xf32, #tpu.memory_space<vmem>>, vector<2x128xf32>,
    } else {
    }
    return
  }
  func.func @transform_0(%arg0: i32) -> (i32, i32) {
    %c0_i32 = arith.constant 0 : i32
    %c0_i32_0 = arith.constant 0 : i32
    return %arg0, %c0_i32 : i32, i32
  }
  func.func @transform_1(%arg0: i32) -> (i32, i32) {
    %c0_i32 = arith.constant 0 : i32
    %c0_i32_0 = arith.constant 0 : i32
    %c0_i32_1 = arith.constant 0 : i32
    return %c0_i32, %c0_i32_0 : i32, i32
  }
  func.func @transform_2(%arg0: i32) -> (i32, i32) {
    %c0_i32 = arith.constant 0 : i32
    %c0_i32_0 = arith.constant 0 : i32
    %c0_i32_1 = arith.constant 0 : i32
    return %c0_i32, %c0_i32_0 : i32, i32
  }
  func.func @transform_3(%arg0: i32) -> (i32, i32) {
    %c0_i32 = arith.constant 0 : i32
    %c0_i32_0 = arith.constant 0 : i32
    %c0_i32_1 = arith.constant 0 : i32
    return %c0_i32, %c0_i32_0 : i32, i32
  }
  func.func @transform_4(%arg0: i32) -> (i32, i32, i32) {
    %c0_i32 = arith.constant 0 : i32
    %c0_i32_0 = arith.constant 0 : i32
    %c0_i32_1 = arith.constant 0 : i32
    return %arg0, %c0_i32, %c0_i32_0 : i32, i32, i32
  }
  func.func @transform_5(%arg0: i32) -> (i32, i32) {
    %c0_i32 = arith.constant 0 : i32
    %c0_i32_0 = arith.constant 0 : i32
    %c0_i32_1 = arith.constant 0 : i32
    return %c0_i32, %c0_i32_0 : i32, i32
  }
}

</mosaic_0001>

<llo_original>
// kernel: tpu_custom_call.1
$region0: #{tpu_custom_call.1}
  #allocation0 [shape = 'u32[]', space=smem, size = 0x4, offset = 0x4, fixed_abs, tag = 'smem constant byte address 0x4 - core index']
  #allocation1 [shape = 'u32[72,128]{1,0:T(1,128)}', space=vmem, size = 0x9000, scoped, tag = 'internal scratch']
  #allocation2 [shape = 'f32[2,128]{1,0:T(2,128)}', space=vmem, size = 0x400, scoped, tag = 'scratch operand']
  #allocation3 [shape = 'f32[4,2,128]{2,1,0:T(2,128)}', space=vmem, size = 0x1000, scoped, tag = 'scratch operand']
  %s0 = inlined_call_operand.hbm [shape: f32[16,16], index: 0, kind: input, shape index: {}]
  %s1 = inlined_call_operand.hbm [shape: f32[16,128], index: 1, kind: input, shape index: {}]
  %s2 = inlined_call_operand.vmem [shape: f32[1,128], index: 2, kind: input, shape index: {}]
  %s3 = inlined_call_operand.hbm [shape: f32[128,128], index: 3, kind: input, shape index: {}]
  %s4 = inlined_call_operand.hbm [shape: f32[8,2,128], index: 4, kind: output, shape index: {0}]
  %s5 = inlined_call_operand.hbm [shape: f32[2,128], index: 5, kind: output, shape index: {1}]
  %6 = xla_tuple %s4, %s5
  %s7 = sld [smem:[#allocation0]]
  $region77: #{tpu_custom_call.1} parent=0
    _
  %s9 = ssub.s32 1, %s7
  %s10 = scalar_select 0, %s9, %s7
  $region1: #{tpu_custom_call.1} parent=0
    #allocation4 [shape = 'u8[8192]{0}', space=vmem, size = 0x2000, scoped, tag = 'input window, operand 0']
    #allocation5 [shape = 's32[2]{0}', space=sflag, size = 0x8, scoped, tag = 'scoped memory for tpu_custom_call.1']
    #allocation6 [shape = 's32[2]{0}', space=sflag, size = 0x8, scoped, tag = 'scoped memory for tpu_custom_call.1']
    #allocation7 [shape = 'u8[8192]{0}', space=vmem, size = 0x2000, scoped, tag = 'input window, operand 1, single buffered']
    #allocation8 [shape = 's32[1]{0}', space=sflag, size = 0x4, scoped, tag = 'scoped memory for tpu_custom_call.1']
    #allocation9 [shape = 'u8[65536]{0}', space=vmem, size = 0x10000, scoped, tag = 'input window, operand 3, single buffered']
    #allocation10 [shape = 'u8[8192]{0}', space=vmem, size = 0x2000, scoped, tag = 'output window, operand 0']
    #allocation11 [shape = 'u8[1024]{0}', space=vmem, size = 0x400, scoped, tag = 'output window, operand 1, single buffered']
    #allocation12 [shape = 's32[1]{0}', space=sflag, size = 0x4, scoped, tag = 'scoped memory for tpu_custom_call.1']
    %11 = vsyncpa [#allocation5], 0
    %s12 = scalar_lea.sflag [#allocation5], 1
    %13 = vsyncpa %s12, 0
    %14 = vsyncpa [#allocation8], 0
    %15 = vsyncpa [#allocation6], 0
    %s16 = scalar_lea.sflag [#allocation6], 1
    %17 = vsyncpa %s16, 0
    %18 = vsyncpa [#allocation12], 0
    loop: start=0, step=1, limit=4
    $region2: #{tpu_custom_call.1} parent=1 // loop_pre_header
      _
    $region3: #{tpu_custom_call.1} parent=1 // loop_header
      %s20 = sphi 0, %s24
      %p21 = scmp.ge.s32.totalorder %s20, 4
      %s30 = sphi 0, %s32
      %s33 = sphi 0, %s30
      %s34 = sphi 0, %s33
      %s50 = sphi 0, %s34
      %s54 = sphi 0, %s54
      %s56 = sphi 0, %s54
      %s57 = sphi 0, %s56
      %s71 = sphi 0, %s57
      %s75 = sphi 0, %s75
      %s77 = sphi 0, %s75
      %s78 = sphi 0, %s77
      %s92 = sphi 0, %s78
      %s96 = sphi 0, %s96
      %s98 = sphi 0, %s96
      %s99 = sphi 0, %s98
      %s113 = sphi 0, %s99
      %s119 = sphi 0, %s121
      %s122 = sphi 0, %s119
      %s123 = sphi 0, %s122
      %s139 = sphi 0, %s123
      %s143 = sphi 0, %s143
      %s145 = sphi 0, %s143
      %s146 = sphi 0, %s145
      %s160 = sphi 0, %s146
    $region4: #{tpu_custom_call.1} parent=1 // loop_header_branch
      %23 = sbr.rel (%p21) target = $region8
    $region5: #{tpu_custom_call.1} parent=1 // loop_body
      %s25 = ssub.s32 %s20, 1
      %s26 = ssub.s32 %s20, 2
      %s27 = sadd.s32 %s20, 1
      %s28 = ssub.s32 %s20, %s27
      %p29 = scmp.eq.s32.totalorder %s28, 0
      %s31 = sadd.s32 %s30, 1
      %s32 = scalar_select %p29, %s30, %s31
      %p35 = pneg %p29
      %p36 = scmp.eq.s32.totalorder %s20, 1
      %p37 = por %p35, %p36
      %p38 = scmp.ne.s32.totalorder %s30, %s33
      %p39 = scmp.eq.s32.totalorder %s20, 0
      %p40 = por %p38, %p39
      %p41 = scmp.ne.s32.totalorder %s30, %s33
      %p42 = scmp.eq.s32.totalorder %s25, 1
      %p43 = por %p41, %p42
      %p44 = scmp.ne.s32.totalorder %s33, %s34
      %p45 = scmp.eq.s32.totalorder %s25, 0
      %p46 = por %p44, %p45
      %p47 = scmp.ne.s32.totalorder %s33, %s34
      %p48 = scmp.eq.s32.totalorder %s26, 1
      %p49 = por %p47, %p48
      %p51 = scmp.ne.s32.totalorder %s34, %s50
      %p52 = scmp.eq.s32.totalorder %s26, 0
      %p53 = por %p51, %p52
      %s55 = sadd.s32 %s54, 1
      %p58 = scmp.eq.s32.totalorder %s20, 1
      %p59 = scmp.ne.s32.totalorder %s54, %s56
      %p60 = scmp.eq.s32.totalorder %s20, 0
      %p61 = por %p59, %p60
      %p62 = scmp.ne.s32.totalorder %s54, %s56
      %p63 = scmp.eq.s32.totalorder %s25, 1
      %p64 = por %p62, %p63
      %p65 = scmp.ne.s32.totalorder %s56, %s57
      %p66 = scmp.eq.s32.totalorder %s25, 0
      %p67 = por %p65, %p66
      %p68 = scmp.ne.s32.totalorder %s56, %s57
      %p69 = scmp.eq.s32.totalorder %s26, 1
      %p70 = por %p68, %p69
      %p72 = scmp.ne.s32.totalorder %s57, %s71
      %p73 = scmp.eq.s32.totalorder %s26, 0
      %p74 = por %p72, %p73
      %s76 = sadd.s32 %s75, 1
      %p79 = scmp.eq.s32.totalorder %s20, 1
      %p80 = scmp.ne.s32.totalorder %s75, %s77
      %p81 = scmp.eq.s32.totalorder %s20, 0
      %p82 = por %p80, %p81
      %p83 = scmp.ne.s32.totalorder %s75, %s77
      %p84 = scmp.eq.s32.totalorder %s25, 1
      %p85 = por %p83, %p84
      %p86 = scmp.ne.s32.totalorder %s77, %s78
      %p87 = scmp.eq.s32.totalorder %s25, 0
      %p88 = por %p86, %p87
      %p89 = scmp.ne.s32.totalorder %s77, %s78
      %p90 = scmp.eq.s32.totalorder %s26, 1
      %p91 = por %p89, %p90
      %p93 = scmp.ne.s32.totalorder %s78, %s92
      %p94 = scmp.eq.s32.totalorder %s26, 0
      %p95 = por %p93, %p94
      %s97 = sadd.s32 %s96, 1
      %p100 = scmp.eq.s32.totalorder %s20, 1
      %p101 = scmp.ne.s32.totalorder %s96, %s98
      %p102 = scmp.eq.s32.totalorder %s20, 0
      %p103 = por %p101, %p102
      %p104 = scmp.ne.s32.totalorder %s96, %s98
      %p105 = scmp.eq.s32.totalorder %s25, 1
      %p106 = por %p104, %p105
      %p107 = scmp.ne.s32.totalorder %s98, %s99
      %p108 = scmp.eq.s32.totalorder %s25, 0
      %p109 = por %p107, %p108
      %p110 = scmp.ne.s32.totalorder %s98, %s99
      %p111 = scmp.eq.s32.totalorder %s26, 1
      %p112 = por %p110, %p111
      %p114 = scmp.ne.s32.totalorder %s99, %s113
      %p115 = scmp.eq.s32.totalorder %s26, 0
      %p116 = por %p114, %p115
      %s117 = ssub.s32 %s20, %s27
      %p118 = scmp.eq.s32.totalorder %s117, 0
      %s120 = sadd.s32 %s119, 1
      %s121 = scalar_select %p118, %s119, %s120
      %p124 = pneg %p118
      %p125 = scmp.eq.s32.totalorder %s20, 1
      %p126 = por %p124, %p125
      %p127 = scmp.ne.s32.totalorder %s119, %s122
      %p128 = scmp.eq.s32.totalorder %s20, 0
      %p129 = por %p127, %p128
      %p130 = scmp.ne.s32.totalorder %s119, %s122
      %p131 = scmp.eq.s32.totalorder %s25, 1
      %p132 = por %p130, %p131
      %p133 = scmp.ne.s32.totalorder %s122, %s123
      %p134 = scmp.eq.s32.totalorder %s25, 0
      %p135 = por %p133, %p134
      %p136 = scmp.ne.s32.totalorder %s122, %s123
      %p137 = scmp.eq.s32.totalorder %s26, 1
      %p138 = por %p136, %p137
      %p140 = scmp.ne.s32.totalorder %s123, %s139
      %p141 = scmp.eq.s32.totalorder %s26, 0
      %p142 = por %p140, %p141
      %s144 = sadd.s32 %s143, 1
      %p147 = scmp.eq.s32.totalorder %s20, 1
      %p148 = scmp.ne.s32.totalorder %s143, %s145
      %p149 = scmp.eq.s32.totalorder %s20, 0
      %p150 = por %p148, %p149
      %p151 = scmp.ne.s32.totalorder %s143, %s145
      %p152 = scmp.eq.s32.totalorder %s25, 1
      %p153 = por %p151, %p152
      %p154 = scmp.ne.s32.totalorder %s145, %s146
      %p155 = scmp.eq.s32.totalorder %s25, 0
      %p156 = por %p154, %p155
      %p157 = scmp.ne.s32.totalorder %s145, %s146
      %p158 = scmp.eq.s32.totalorder %s26, 1
      %p159 = por %p157, %p158
      %p161 = scmp.ne.s32.totalorder %s146, %s160
      %p162 = scmp.eq.s32.totalorder %s26, 0
      %p163 = por %p161, %p162
      %p164 = scmp.le.s32.totalorder 1, %s20
      %p165 = scmp.lt.s32.totalorder %s20, 3
      %p166 = pnand %p164, %p165
      %p167 = pneg %p166
      // Predicated region
      $region9: #{tpu_custom_call.1} parent=5 // pred_check
        _
      $region10: #{tpu_custom_call.1} parent=5 // pred_check_branch
        %169 = sbr.rel (%p166) target = $region12
      $region11: #{tpu_custom_call.1} parent=5 // pred_region
        %s170 = ssub.s32 %s20, 1
        // Predicated region
        $region13: #{tpu_custom_call.1} parent=11 // pred_check
          %p171 = pneg %p67
        $region14: #{tpu_custom_call.1} parent=11 // pred_check_branch
          %173 = sbr.rel (%p171) target = $region16
        $region15: #{tpu_custom_call.1} parent=11 // pred_region
          %175 = vsyncadd [#allocation8], 0
          %s176 = sshll.u32 %s1, 4
          %s177 = int_to_ptr.hbm [resolvable:$true] %s176
          %s178 = sshll.u32 [#allocation7], 4
          %s179 = int_to_ptr.vmem [resolvable:$true] %s178
          %184 = dma.hbm_to_vmem [thread:$0]  %s177, 256, %s179, [#allocation8], 128, 128, 8
        $region16: #{tpu_custom_call.1} parent=11 // pred_fallthru
          _
        // Predicated region
        $region17: #{tpu_custom_call.1} parent=11 // pred_check
          %p185 = pneg %p88
        $region18: #{tpu_custom_call.1} parent=11 // pred_check_branch
          %187 = sbr.rel (%p185) target = $region20
        $region19: #{tpu_custom_call.1} parent=11 // pred_region
          _
        $region20: #{tpu_custom_call.1} parent=11 // pred_fallthru
          _
        // Predicated region
        $region21: #{tpu_custom_call.1} parent=11 // pred_check
          %p188 = pneg %p109
        $region22: #{tpu_custom_call.1} parent=11 // pred_check_branch
          %190 = sbr.rel (%p188) target = $region24
        $region23: #{tpu_custom_call.1} parent=11 // pred_region
          %192 = vsyncadd [#allocation8], 0
          %s193 = sshll.u32 %s3, 4
          %s194 = int_to_ptr.hbm [resolvable:$true] %s193
          %s195 = sshll.u32 [#allocation9], 4
          %s196 = int_to_ptr.vmem [resolvable:$true] %s195
          %201 = dma.hbm_to_vmem [thread:$0]  %s194, 2048, %s196, [#allocation8], 128, 128, 8
        $region24: #{tpu_custom_call.1} parent=11 // pred_fallthru
          _
      $region12: #{tpu_custom_call.1} parent=5 // pred_fallthru
        _
      %p202 = scmp.lt.s32.totalorder %s20, 2
      // Predicated region
      $region25: #{tpu_custom_call.1} parent=5 // pred_check
        %p203 = pneg %p202
      $region26: #{tpu_custom_call.1} parent=5 // pred_check_branch
        %205 = sbr.rel (%p203) target = $region28
      $region27: #{tpu_custom_call.1} parent=5 // pred_region
        // Predicated region
        $region29: #{tpu_custom_call.1} parent=27 // pred_check
          %p206 = pneg %p40
        $region30: #{tpu_custom_call.1} parent=27 // pred_check_branch
          %208 = sbr.rel (%p206) target = $region32
        $region31: #{tpu_custom_call.1} parent=27 // pred_region
          %s209 = sand.u32 %s30, 1
          %s210 = scalar_lea.sflag [#allocation5], %s209
          %s211 = sand.u32 %s30, 1
          %s212 = smul.addr %s211, 8
          %s213 = scalar_lea.vmem [#allocation4], %s212
          %215 = vsyncadd %s210, 0
          %s216 = smul.addr %s20, 8
          %s217 = scalar_lea.hbm %s0, %s216
          %s219 = sshll.u32 %s217, 4
          %s220 = int_to_ptr.hbm [resolvable:$true] %s219
          %s221 = sshll.u32 %s213, 4
          %s222 = int_to_ptr.vmem [resolvable:$true] %s221
          %224 = dma.hbm_to_vmem [thread:$0]  %s220, 128, %s222, %s210
        $region32: #{tpu_custom_call.1} parent=27 // pred_fallthru
          _
      $region28: #{tpu_custom_call.1} parent=5 // pred_fallthru
        _
      %p225 = scmp.le.s32.totalorder 1, %s20
      %p226 = scmp.lt.s32.totalorder %s20, 3
      %p227 = pnand %p225, %p226
      %p228 = pneg %p227
      // Predicated region
      $region33: #{tpu_custom_call.1} parent=5 // pred_check
        _
      $region34: #{tpu_custom_call.1} parent=5 // pred_check_branch
        %230 = sbr.rel (%p227) target = $region36
      $region35: #{tpu_custom_call.1} parent=5 // pred_region
        %s231 = ssub.s32 %s20, 1
        %s232 = sand.u32 %s33, 1
        %s233 = scalar_lea.sflag [#allocation5], %s232
        %s234 = sand.u32 %s33, 1
        %s235 = smul.addr %s234, 8
        %s236 = scalar_lea.vmem [#allocation4], %s235
        // Predicated region
        $region37: #{tpu_custom_call.1} parent=35 // pred_check
          %p237 = pneg %p46
        $region38: #{tpu_custom_call.1} parent=35 // pred_check_branch
          %239 = sbr.rel (%p237) target = $region40
        $region39: #{tpu_custom_call.1} parent=35 // pred_region
          %241 = dma.done %s233, 128
        $region40: #{tpu_custom_call.1} parent=35 // pred_fallthru
          _
        // Predicated region
        $region41: #{tpu_custom_call.1} parent=35 // pred_check
          %p242 = pneg %p67
        $region42: #{tpu_custom_call.1} parent=35 // pred_check_branch
          %244 = sbr.rel (%p242) target = $region44
        $region43: #{tpu_custom_call.1} parent=35 // pred_region
          %246 = dma.done [#allocation8], 256
        $region44: #{tpu_custom_call.1} parent=35 // pred_fallthru
          _
        // Predicated region
        $region45: #{tpu_custom_call.1} parent=35 // pred_check
          %p247 = pneg %p109
        $region46: #{tpu_custom_call.1} parent=35 // pred_check_branch
          %249 = sbr.rel (%p247) target = $region48
        $region47: #{tpu_custom_call.1} parent=35 // pred_region
          %251 = dma.done [#allocation8], 2048
        $region48: #{tpu_custom_call.1} parent=35 // pred_fallthru
          _
        %s252 = sand.u32 %s33, 1
        %s253 = scalar_lea.sflag [#allocation5], %s252
        %s254 = sand.u32 %s33, 1
        %s255 = smul.addr %s254, 8
        %s256 = scalar_lea.vmem [#allocation4], %s255
        %p257 = pneg %p46
        %p258 = pneg %p43
        %p259 = pneg %p67
        %p260 = pneg %p64
        %p261 = pneg %p88
        %p262 = pneg %p85
        %p263 = pneg %p109
        %p264 = pneg %p106
        %p265 = pneg %p135
        %p266 = pneg %p132
        %s267 = sand.u32 %s122, 1
        %s268 = scalar_lea.sflag [#allocation6], %s267
        %s269 = sand.u32 %s122, 1
        %s270 = smul.addr %s269, 8
        %s271 = scalar_lea.vmem [#allocation10], %s270
        %p272 = pneg %p156
        %p273 = pneg %p153
        %s274 = smul.u32 4, %s25
        %p275 = scmp.eq.s32.totalorder %s25, 0
        // Predicated region
        $region49: #{tpu_custom_call.1} parent=35 // pred_check
          %p276 = pneg %p275
        $region50: #{tpu_custom_call.1} parent=35 // pred_check_branch
          %278 = sbr.rel (%p276) target = $region52
        $region51: #{tpu_custom_call.1} parent=35 // pred_region
          %279 = vst [vmem:[#allocation2] sm:$0x3] 0.0
        $region52: #{tpu_custom_call.1} parent=35 // pred_fallthru
          _
        %v280 = vld [vmem:[%s236] sm:$0xff]
        %v281 = vld [vmem:[#allocation7] sm:$0xff]
        %v282 = vld [vmem:[#allocation7 + $0x8] sm:$0xff]
        %v283 = vld [vmem:[%s2] sm:$0x1]
        %v285 = vperm.slane %v283, 0
        %vm287 = vcmask 130048
        %v289 = vsel %vm287, %v280, 0
        %291 = vmatpush.msra.mxu0 0.0
        %292 = vmatpush.msra.mxu0 0.0
        %293 = vmatpush.msra.mxu0 0.0
        %294 = vmatpush.msra.mxu0 0.0
        %295 = vmatpush.msra.mxu0 0.0
        %296 = vmatpush.msra.mxu0 0.0
        %297 = vmatpush.msra.mxu0 0.0
        %298 = vmatpush.msra.mxu0 0.0
        %299 = vmatpush.msra.mxu0 0.0
        %300 = vmatpush.msra.mxu0 0.0
        %301 = vmatpush.msra.mxu0 0.0
        %302 = vmatpush.msra.mxu0 0.0
        %303 = vmatpush.msra.mxu0 0.0
        %304 = vmatpush.msra.mxu0 0.0
        %305 = vmatpush.msra.mxu0 %v282
        %306 = vmatpush.msra.mxu0 %v281
        %307 = vmatmul.f32.gmra.mxu0 %v289
        %v308 = vpop.f32.mrf.mxu0
        %v309 = vadd.f32 %v285, %v308
        %310 = vdwg.mxu0
        %311 = vst [vmem:[#allocation3] sm:$0x3] %v309
        %s312 = scalar_lea.vmem [#allocation3], 2
        %313 = vst [vmem:[%s312 - $0x2] sm:$0xc] %v309
        %s314 = scalar_lea.vmem [#allocation3], 4
        %315 = vst [vmem:[%s314 - $0x4] sm:$0x30] %v309
        %s316 = scalar_lea.vmem [#allocation3], 6
        %317 = vst [vmem:[%s316 - $0x6] sm:$0xc0] %v309
        %v318 = vld [vmem:[#allocation9] sm:$0xff]
        %v319 = vld [vmem:[#allocation9 + $0x8] sm:$0xff]
        %v320 = vld [vmem:[#allocation9 + $0x10] sm:$0xff]
        %v321 = vld [vmem:[#allocation9 + $0x18] sm:$0xff]
        %v322 = vld [vmem:[#allocation9 + $0x20] sm:$0xff]
        %v323 = vld [vmem:[#allocation9 + $0x28] sm:$0xff]
        %v324 = vld [vmem:[#allocation9 + $0x30] sm:$0xff]
        %v325 = vld [vmem:[#allocation9 + $0x38] sm:$0xff]
        %v326 = vld [vmem:[#allocation9 + $0x40] sm:$0xff]
        %v327 = vld [vmem:[#allocation9 + $0x48] sm:$0xff]
        %v328 = vld [vmem:[#allocation9 + $0x50] sm:$0xff]
        %v329 = vld [vmem:[#allocation9 + $0x58] sm:$0xff]
        %v330 = vld [vmem:[#allocation9 + $0x60] sm:$0xff]
        %v331 = vld [vmem:[#allocation9 + $0x68] sm:$0xff]
        %v332 = vld [vmem:[#allocation9 + $0x70] sm:$0xff]
        %v333 = vld [vmem:[#allocation9 + $0x78] sm:$0xff]
        %v334 = vld [vmem:[#allocation2] sm:$0x3]
        %v335 = vand.u32 2147483647, %v334
        %vm336 = vcmp.le.f32.partialorder %v335, 0.7853982
        %vm337 = vcmp.lt.s32.totalorder %v334, 0
        %v338 = vand.u32 %v334, 2139095040
        %v339 = vshrl.u32 %v338, 23
        %v340 = vsub.s32 %v339, 127
        %v341 = vand.u32 2147483647, %v334
        %v342 = vand.u32 %v341, 8388607
        %v343 = vor.u32 %v342, 8388608
        %v344 = vsub.s32 0, %v343
        %v345 = vadd.s32 %v340, 1
        %vm346 = vcmp.gt.s32.totalorder %v345, 0
        %v347 = vsel %vm346, %v345, 0
        %v348 = vshrl.u32 %v347, 5
        %v349 = vand.u32 %v347, 31
        %v350 = vsub.s32 32, %v349
        %v351 = vshrl.u32 683565275, %v350
        %v352 = vshll.u32 683565275, %v349
        %v353 = vshrl.u32 2475754826, %v350
        %v354 = vor.u32 %v352, %v353
        %v355 = vshll.u32 2475754826, %v349
        %v356 = vshrl.u32 2131351028, %v350
        %v357 = vor.u32 %v355, %v356
        %v358 = vshll.u32 2131351028, %v349
        %v359 = vshrl.u32 2102212464, %v350
        %v360 = vor.u32 %v358, %v359
        %v361 = vshll.u32 2102212464, %v349
        %v362 = vshrl.u32 920167782, %v350
        %v363 = vor.u32 %v361, %v362
        %v364 = vshll.u32 920167782, %v349
        %v365 = vshrl.u32 1326507024, %v350
        %v366 = vor.u32 %v364, %v365
        %vm367 = vcmp.lt.s32.totalorder %v348, 1
        %vm368 = vcmp.lt.s32.totalorder %v348, 2
        %vm369 = vcmp.lt.s32.totalorder %v348, 3
        %vm370 = vcmp.lt.s32.totalorder %v348, 4
        %v371 = vsel %vm367, %v351, %v354
        %v372 = vsel %vm370, %v360, 2102212464
        %v373 = vsel %vm369, %v357, %v372
        %v374 = vsel %vm368, %v371, %v373
        %v375 = vsel %vm367, %v354, %v357
        %v376 = vsel %vm370, %v363, 920167782
        %v377 = vsel %vm369, %v360, %v376
        %v378 = vsel %vm368, %v375, %v377
        %v379 = vsel %vm367, %v357, %v360
        %v380 = vsel %vm370, %v366, 1326507024
        %v381 = vsel %vm369, %v363, %v380
        %v382 = vsel %vm368, %v379, %v381
        %v383 = vshll.u32 %v343, 8
        %v384 = vand.u32 %v383, 65535
        %v385 = vshrl.u32 %v383, 16
        %v386 = vand.u32 %v382, 65535
        %v387 = vshrl.u32 %v382, 16
        %v388 = vmul.u32 %v384, %v386
        %v389 = vmul.u32 %v384, %v387
        %v390 = vmul.u32 %v385, %v386
        %v391 = vmul.u32 %v385, %v387
        %v392 = vshll.u32 %v389, 16
        %v393 = vshrl.u32 %v389, 16
        %v394 = vshll.u32 %v390, 16
        %v395 = vshrl.u32 %v390, 16
        %vm396 = vc.u32 %v388, %v392
        %v397 = vsel %vm396, 1, 0
        %v398 = vadd.s32 %v388, %v392
        %v399 = vadd.s32 %v391, %v397
        %vm400 = vc.u32 %v398, %v394
        %v401 = vsel %vm400, 1, 0
        %v402 = vadd.s32 %v398, %v394
        %v403 = vadd.s32 %v399, %v401
        %v404 = vadd.s32 %v403, %v393
        %v405 = vadd.s32 %v404, %v395
        %v406 = vand.u32 %v383, 65535
        %v407 = vshrl.u32 %v383, 16
        %v408 = vand.u32 %v378, 65535
        %v409 = vshrl.u32 %v378, 16
        %v410 = vmul.u32 %v406, %v408
        %v411 = vmul.u32 %v406, %v409
        %v412 = vmul.u32 %v407, %v408
        %v413 = vmul.u32 %v407, %v409
        %v414 = vshll.u32 %v411, 16
        %v415 = vshrl.u32 %v411, 16
        %v416 = vshll.u32 %v412, 16
        %v417 = vshrl.u32 %v412, 16
        %vm418 = vc.u32 %v410, %v414
        %v419 = vsel %vm418, 1, 0
        %v420 = vadd.s32 %v410, %v414
        %v421 = vadd.s32 %v413, %v419
        %vm422 = vc.u32 %v420, %v416
        %v423 = vsel %vm422, 1, 0
        %v424 = vadd.s32 %v420, %v416
        %v425 = vadd.s32 %v421, %v423
        %v426 = vadd.s32 %v425, %v415
        %v427 = vadd.s32 %v426, %v417
        %v428 = vmul.u32 %v383, %v374
        %v429 = vadd.s32 %v405, %v424
        %vm430 = vc.u32 %v405, %v424
        %v431 = vadd.s32 %v427, 1
        %v432 = vsel %vm430, %v431, %v427
        %v433 = vadd.s32 %v428, %v432
        %v434 = vadd.s32 %v433, 536870912
        %v435 = vshrl.u32 %v434, 30
        %v436 = vshll.u32 %v435, 30
        %v437 = vsub.s32 %v433, %v436
        %vm438 = vcmp.lt.s32.totalorder %v437, 0
        %v439 = vsub.s32 0, %v437
        %v440 = vsel %vm438, %v439, %v437
        %v441 = vclz %v440
        %v442 = vsub.s32 %v441, 2
        %vm443 = vcmp.gt.s32.totalorder 0, %v442
        %v444 = vsel %vm443, 0, %v442
        %v445 = vsub.s32 32, %v444
        %v446 = vshll.u32 %v437, %v444
        %v447 = vshrl.u32 %v429, %v445
        %v448 = vor.u32 %v446, %v447
        %v449 = vsub.s32 4294967266, %v444
        %v450 = vadd.s32 %v449, 127
        %v451 = vshll.u32 %v450, 23
        %v452 = vor.u32 4788187, %v451
        %v453 = vand.u32 2147483647, %v452
        %v455 = vcvt.s32.f32 %v448
        %v456 = vmul.f32 %v455, %v453
        %v457 = vxor.u32 %v456, 2147483648
        %v458 = vsel %vm337, %v457, %v456
        %v459 = vsub.s32 4, %v435
        %v460 = vsel %vm337, %v459, %v435
        %v461 = vsel %vm336, %v334, %v458
        %v462 = vsel %vm336, 0, %v460
        %v463 = vmul.f32 %v461, %v461
        %v464 = vmul.f32 %v463, -0.001358992
        %v465 = vadd.f32 %v464, 0.041655596
        %v466 = vmul.f32 %v463, %v465
        %v467 = vadd.f32 %v466, -0.4999988
        %v468 = vmul.f32 %v463, %v467
        %v469 = vadd.f32 1.0, %v468
        %v470 = vmul.f32 %v461, %v461
        %v471 = vmul.f32 %v470, -0.00019511016
        %v472 = vadd.f32 %v471, 0.008332121
        %v473 = vmul.f32 %v470, %v472
        %v474 = vadd.f32 %v473, -0.16666654
        %v475 = vmul.f32 %v470, %v474
        %v476 = vadd.f32 %v475, 1.0
        %v477 = vmul.f32 %v476, %v461
        %vm478 = vweird.f32 %v334
        %v479 = vadd.s32 %v462, 3
        %v480 = vand.u32 %v479, 3
        %vm481 = vcmp.lt.s32.totalorder %v480, 2
        %vm482 = vcmp.eq.s32.totalorder %v480, 0
        %v483 = vxor.u32 %v477, 2147483648
        %v484 = vsel %vm482, %v469, %v483
        %vm485 = vcmp.eq.s32.totalorder %v480, 2
        %v486 = vxor.u32 %v469, 2147483648
        %v487 = vsel %vm485, %v486, %v477
        %v488 = vsel %vm481, %v484, %v487
        %v489 = vsel %vm478, nan, %v488
        %v490 = vand.u32 2147483647, %v334
        %vm491 = vcmp.le.f32.partialorder %v490, 0.7853982
        %vm492 = vcmp.lt.s32.totalorder %v334, 0
        %v493 = vand.u32 %v334, 2139095040
        %v494 = vshrl.u32 %v493, 23
        %v495 = vsub.s32 %v494, 127
        %v496 = vand.u32 2147483647, %v334
        %v497 = vand.u32 %v496, 8388607
        %v498 = vor.u32 %v497, 8388608
        %v499 = vsub.s32 0, %v498
        %v500 = vadd.s32 %v495, 1
        %vm501 = vcmp.gt.s32.totalorder %v500, 0
        %v502 = vsel %vm501, %v500, 0
        %v503 = vshrl.u32 %v502, 5
        %v504 = vand.u32 %v502, 31
        %v505 = vsub.s32 32, %v504
        %v506 = vshrl.u32 683565275, %v505
        %v507 = vshll.u32 683565275, %v504
        %v508 = vshrl.u32 2475754826, %v505
        %v509 = vor.u32 %v507, %v508
        %v510 = vshll.u32 2475754826, %v504
        %v511 = vshrl.u32 2131351028, %v505
        %v512 = vor.u32 %v510, %v511
        %v513 = vshll.u32 2131351028, %v504
        %v514 = vshrl.u32 2102212464, %v505
        %v515 = vor.u32 %v513, %v514
        %v516 = vshll.u32 2102212464, %v504
        %v517 = vshrl.u32 920167782, %v505
        %v518 = vor.u32 %v516, %v517
        %v519 = vshll.u32 920167782, %v504
        %v520 = vshrl.u32 1326507024, %v505
        %v521 = vor.u32 %v519, %v520
        %vm522 = vcmp.lt.s32.totalorder %v503, 1
        %vm523 = vcmp.lt.s32.totalorder %v503, 2
        %vm524 = vcmp.lt.s32.totalorder %v503, 3
        %vm525 = vcmp.lt.s32.totalorder %v503, 4
        %v526 = vsel %vm522, %v506, %v509
        %v527 = vsel %vm525, %v515, 2102212464
        %v528 = vsel %vm524, %v512, %v527
        %v529 = vsel %vm523, %v526, %v528
        %v530 = vsel %vm522, %v509, %v512
        %v531 = vsel %vm525, %v518, 920167782
        %v532 = vsel %vm524, %v515, %v531
        %v533 = vsel %vm523, %v530, %v532
        %v534 = vsel %vm522, %v512, %v515
        %v535 = vsel %vm525, %v521, 1326507024
        %v536 = vsel %vm524, %v518, %v535
        %v537 = vsel %vm523, %v534, %v536
        %v538 = vshll.u32 %v498, 8
        %v539 = vand.u32 %v538, 65535
        %v540 = vshrl.u32 %v538, 16
        %v541 = vand.u32 %v537, 65535
        %v542 = vshrl.u32 %v537, 16
        %v543 = vmul.u32 %v539, %v541
        %v544 = vmul.u32 %v539, %v542
        %v545 = vmul.u32 %v540, %v541
        %v546 = vmul.u32 %v540, %v542
        %v547 = vshll.u32 %v544, 16
        %v548 = vshrl.u32 %v544, 16
        %v549 = vshll.u32 %v545, 16
        %v550 = vshrl.u32 %v545, 16
        %vm551 = vc.u32 %v543, %v547
        %v552 = vsel %vm551, 1, 0
        %v553 = vadd.s32 %v543, %v547
        %v554 = vadd.s32 %v546, %v552
        %vm555 = vc.u32 %v553, %v549
        %v556 = vsel %vm555, 1, 0
        %v557 = vadd.s32 %v553, %v549
        %v558 = vadd.s32 %v554, %v556
        %v559 = vadd.s32 %v558, %v548
        %v560 = vadd.s32 %v559, %v550
        %v561 = vand.u32 %v538, 65535
        %v562 = vshrl.u32 %v538, 16
        %v563 = vand.u32 %v533, 65535
        %v564 = vshrl.u32 %v533, 16
        %v565 = vmul.u32 %v561, %v563
        %v566 = vmul.u32 %v561, %v564
        %v567 = vmul.u32 %v562, %v563
        %v568 = vmul.u32 %v562, %v564
        %v569 = vshll.u32 %v566, 16
        %v570 = vshrl.u32 %v566, 16
        %v571 = vshll.u32 %v567, 16
        %v572 = vshrl.u32 %v567, 16
        %vm573 = vc.u32 %v565, %v569
        %v574 = vsel %vm573, 1, 0
        %v575 = vadd.s32 %v565, %v569
        %v576 = vadd.s32 %v568, %v574
        %vm577 = vc.u32 %v575, %v571
        %v578 = vsel %vm577, 1, 0
        %v579 = vadd.s32 %v575, %v571
        %v580 = vadd.s32 %v576, %v578
        %v581 = vadd.s32 %v580, %v570
        %v582 = vadd.s32 %v581, %v572
        %v583 = vmul.u32 %v538, %v529
        %v584 = vadd.s32 %v560, %v579
        %vm585 = vc.u32 %v560, %v579
        %v586 = vadd.s32 %v582, 1
        %v587 = vsel %vm585, %v586, %v582
        %v588 = vadd.s32 %v583, %v587
        %v589 = vadd.s32 %v588, 536870912
        %v590 = vshrl.u32 %v589, 30
        %v591 = vshll.u32 %v590, 30
        %v592 = vsub.s32 %v588, %v591
        %vm593 = vcmp.lt.s32.totalorder %v592, 0
        %v594 = vsub.s32 0, %v592
        %v595 = vsel %vm593, %v594, %v592
        %v596 = vclz %v595
        %v597 = vsub.s32 %v596, 2
        %vm598 = vcmp.gt.s32.totalorder 0, %v597
        %v599 = vsel %vm598, 0, %v597
        %v600 = vsub.s32 32, %v599
        %v601 = vshll.u32 %v592, %v599
        %v602 = vshrl.u32 %v584, %v600
        %v603 = vor.u32 %v601, %v602
        %v604 = vsub.s32 4294967266, %v599
        %v605 = vadd.s32 %v604, 127
        %v606 = vshll.u32 %v605, 23
        %v607 = vor.u32 4788187, %v606
        %v608 = vand.u32 2147483647, %v607
        %v610 = vcvt.s32.f32 %v603
        %v611 = vmul.f32 %v610, %v608
        %v612 = vxor.u32 %v611, 2147483648
        %v613 = vsel %vm492, %v612, %v611
        %v614 = vsub.s32 4, %v590
        %v615 = vsel %vm492, %v614, %v590
        %v616 = vsel %vm491, %v334, %v613
        %v617 = vsel %vm491, 0, %v615
        %v618 = vmul.f32 %v616, %v616
        %v619 = vmul.f32 %v618, -0.001358992
        %v620 = vadd.f32 %v619, 0.041655596
        %v621 = vmul.f32 %v618, %v620
        %v622 = vadd.f32 %v621, -0.4999988
        %v623 = vmul.f32 %v618, %v622
        %v624 = vadd.f32 1.0, %v623
        %v625 = vmul.f32 %v616, %v616
        %v626 = vmul.f32 %v625, -0.00019511016
        %v627 = vadd.f32 %v626, 0.008332121
        %v628 = vmul.f32 %v625, %v627
        %v629 = vadd.f32 %v628, -0.16666654
        %v630 = vmul.f32 %v625, %v629
        %v631 = vadd.f32 %v630, 1.0
        %v632 = vmul.f32 %v631, %v616
        %vm633 = vweird.f32 %v334
        %v634 = vand.u32 %v617, 3
        %vm635 = vcmp.lt.s32.totalorder %v634, 2
        %vm636 = vcmp.eq.s32.totalorder %v634, 0
        %v637 = vxor.u32 %v632, 2147483648
        %v638 = vsel %vm636, %v624, %v637
        %vm639 = vcmp.eq.s32.totalorder %v634, 2
        %v640 = vxor.u32 %v624, 2147483648
        %v641 = vsel %vm639, %v640, %v632
        %v642 = vsel %vm635, %v638, %v641
        %v643 = vsel %vm633, nan, %v642
        %644 = vmatpush.msra.mxu0 %v333
        %645 = vmatpush.msra.mxu0 %v332
        %646 = vmatpush.msra.mxu0 %v331
        %647 = vmatpush.msra.mxu0 %v330
        %648 = vmatpush.msra.mxu0 %v329
        %649 = vmatpush.msra.mxu0 %v328
        %650 = vmatpush.msra.mxu0 %v327
        %651 = vmatpush.msra.mxu0 %v326
        %652 = vmatpush.msra.mxu0 %v325
        %653 = vmatpush.msra.mxu0 %v324
        %654 = vmatpush.msra.mxu0 %v323
        %655 = vmatpush.msra.mxu0 %v322
        %656 = vmatpush.msra.mxu0 %v321
        %657 = vmatpush.msra.mxu0 %v320
        %658 = vmatpush.msra.mxu0 %v319
        %659 = vmatpush.msra.mxu0 %v318
        %660 = vmatmul.f32.gmra.mxu0 %v643
        %v661 = vpop.f32.mrf.mxu0
        %v662 = vadd.f32 0.0, %v661
        %663 = vdwg.mxu0
        %664 = vmatpush.msra.mxu0 %v333
        %665 = vmatpush.msra.mxu0 %v332
        %666 = vmatpush.msra.mxu0 %v331
        %667 = vmatpush.msra.mxu0 %v330
        %668 = vmatpush.msra.mxu0 %v329
        %669 = vmatpush.msra.mxu0 %v328
        %670 = vmatpush.msra.mxu0 %v327
        %671 = vmatpush.msra.mxu0 %v326
        %672 = vmatpush.msra.mxu0 %v325
        %673 = vmatpush.msra.mxu0 %v324
        %674 = vmatpush.msra.mxu0 %v323
        %675 = vmatpush.msra.mxu0 %v322
        %676 = vmatpush.msra.mxu0 %v321
        %677 = vmatpush.msra.mxu0 %v320
        %678 = vmatpush.msra.mxu0 %v319
        %679 = vmatpush.msra.mxu0 %v318
        %680 = vmatmul.f32.gmra.mxu0 %v489
        %v681 = vpop.f32.mrf.mxu0
        %v682 = vadd.f32 0.0, %v681
        %683 = vdwg.mxu0
        %v684 = vmul.f32 %v489, %v662
        %v685 = vmul.f32 %v643, %v682
        %v686 = vsub.f32 %v684, %v685
        %v687 = vld [vmem:[#allocation3] sm:$0x3]
        %v688 = vadd.f32 %v686, %v687
        %v689 = vadd.f32 %v688, %v334
        %v690 = vmul.f32 %v689, 0.15915494
        %v691 = vfloor.f32 %v690
        %v692 = vmul.f32 %v691, 6.2831855
        %v693 = vsub.f32 %v689, %v692
        %694 = vst [vmem:[%s271] sm:$0x3] %v693
        %v695 = vand.u32 2147483647, %v693
        %vm696 = vcmp.le.f32.partialorder %v695, 0.7853982
        %vm697 = vcmp.lt.s32.totalorder %v693, 0
        %v698 = vand.u32 %v693, 2139095040
        %v699 = vshrl.u32 %v698, 23
        %v700 = vsub.s32 %v699, 127
        %v701 = vand.u32 2147483647, %v693
        %v702 = vand.u32 %v701, 8388607
        %v703 = vor.u32 %v702, 8388608
        %v704 = vsub.s32 0, %v703
        %v705 = vadd.s32 %v700, 1
        %vm706 = vcmp.gt.s32.totalorder %v705, 0
        %v707 = vsel %vm706, %v705, 0
        %v708 = vshrl.u32 %v707, 5
        %v709 = vand.u32 %v707, 31
        %v710 = vsub.s32 32, %v709
        %v711 = vshrl.u32 683565275, %v710
        %v712 = vshll.u32 683565275, %v709
        %v713 = vshrl.u32 2475754826, %v710
        %v714 = vor.u32 %v712, %v713
        %v715 = vshll.u32 2475754826, %v709
        %v716 = vshrl.u32 2131351028, %v710
        %v717 = vor.u32 %v715, %v716
        %v718 = vshll.u32 2131351028, %v709
        %v719 = vshrl.u32 2102212464, %v710
        %v720 = vor.u32 %v718, %v719
        %v721 = vshll.u32 2102212464, %v709
        %v722 = vshrl.u32 920167782, %v710
        %v723 = vor.u32 %v721, %v722
        %v724 = vshll.u32 920167782, %v709
        %v725 = vshrl.u32 1326507024, %v710
        %v726 = vor.u32 %v724, %v725
        %vm727 = vcmp.lt.s32.totalorder %v708, 1
        %vm728 = vcmp.lt.s32.totalorder %v708, 2
        %vm729 = vcmp.lt.s32.totalorder %v708, 3
        %vm730 = vcmp.lt.s32.totalorder %v708, 4
        %v731 = vsel %vm727, %v711, %v714
        %v732 = vsel %vm730, %v720, 2102212464
        %v733 = vsel %vm729, %v717, %v732
        %v734 = vsel %vm728, %v731, %v733
        %v735 = vsel %vm727, %v714, %v717
        %v736 = vsel %vm730, %v723, 920167782
        %v737 = vsel %vm729, %v720, %v736
        %v738 = vsel %vm728, %v735, %v737
        %v739 = vsel %vm727, %v717, %v720
        %v740 = vsel %vm730, %v726, 1326507024
        %v741 = vsel %vm729, %v723, %v740
        %v742 = vsel %vm728, %v739, %v741
        %v743 = vshll.u32 %v703, 8
        %v744 = vand.u32 %v743, 65535
        %v745 = vshrl.u32 %v743, 16
        %v746 = vand.u32 %v742, 65535
        %v747 = vshrl.u32 %v742, 16
        %v748 = vmul.u32 %v744, %v746
        %v749 = vmul.u32 %v744, %v747
        %v750 = vmul.u32 %v745, %v746
        %v751 = vmul.u32 %v745, %v747
        %v752 = vshll.u32 %v749, 16
        %v753 = vshrl.u32 %v749, 16
        %v754 = vshll.u32 %v750, 16
        %v755 = vshrl.u32 %v750, 16
        %vm756 = vc.u32 %v748, %v752
        %v757 = vsel %vm756, 1, 0
        %v758 = vadd.s32 %v748, %v752
        %v759 = vadd.s32 %v751, %v757
        %vm760 = vc.u32 %v758, %v754
        %v761 = vsel %vm760, 1, 0
        %v762 = vadd.s32 %v758, %v754
        %v763 = vadd.s32 %v759, %v761
        %v764 = vadd.s32 %v763, %v753
        %v765 = vadd.s32 %v764, %v755
        %v766 = vand.u32 %v743, 65535
        %v767 = vshrl.u32 %v743, 16
        %v768 = vand.u32 %v738, 65535
        %v769 = vshrl.u32 %v738, 16
        %v770 = vmul.u32 %v766, %v768
        %v771 = vmul.u32 %v766, %v769
        %v772 = vmul.u32 %v767, %v768
        %v773 = vmul.u32 %v767, %v769
        %v774 = vshll.u32 %v771, 16
        %v775 = vshrl.u32 %v771, 16
        %v776 = vshll.u32 %v772, 16
        %v777 = vshrl.u32 %v772, 16
        %vm778 = vc.u32 %v770, %v774
        %v779 = vsel %vm778, 1, 0
        %v780 = vadd.s32 %v770, %v774
        %v781 = vadd.s32 %v773, %v779
        %vm782 = vc.u32 %v780, %v776
        %v783 = vsel %vm782, 1, 0
        %v784 = vadd.s32 %v780, %v776
        %v785 = vadd.s32 %v781, %v783
        %v786 = vadd.s32 %v785, %v775
        %v787 = vadd.s32 %v786, %v777
        %v788 = vmul.u32 %v743, %v734
        %v789 = vadd.s32 %v765, %v784
        %vm790 = vc.u32 %v765, %v784
        %v791 = vadd.s32 %v787, 1
        %v792 = vsel %vm790, %v791, %v787
        %v793 = vadd.s32 %v788, %v792
        %v794 = vadd.s32 %v793, 536870912
        %v795 = vshrl.u32 %v794, 30
        %v796 = vshll.u32 %v795, 30
        %v797 = vsub.s32 %v793, %v796
        %vm798 = vcmp.lt.s32.totalorder %v797, 0
        %v799 = vsub.s32 0, %v797
        %v800 = vsel %vm798, %v799, %v797
        %v801 = vclz %v800
        %v802 = vsub.s32 %v801, 2
        %vm803 = vcmp.gt.s32.totalorder 0, %v802
        %v804 = vsel %vm803, 0, %v802
        %v805 = vsub.s32 32, %v804
        %v806 = vshll.u32 %v797, %v804
        %v807 = vshrl.u32 %v789, %v805
        %v808 = vor.u32 %v806, %v807
        %v809 = vsub.s32 4294967266, %v804
        %v810 = vadd.s32 %v809, 127
        %v811 = vshll.u32 %v810, 23
        %v812 = vor.u32 4788187, %v811
        %v813 = vand.u32 2147483647, %v812
        %v815 = vcvt.s32.f32 %v808
        %v816 = vmul.f32 %v815, %v813
        %v817 = vxor.u32 %v816, 2147483648
        %v818 = vsel %vm697, %v817, %v816
        %v819 = vsub.s32 4, %v795
        %v820 = vsel %vm697, %v819, %v795
        %v821 = vsel %vm696, %v693, %v818
        %v822 = vsel %vm696, 0, %v820
        %v823 = vmul.f32 %v821, %v821
        %v824 = vmul.f32 %v823, -0.001358992
        %v825 = vadd.f32 %v824, 0.041655596
        %v826 = vmul.f32 %v823, %v825
        %v827 = vadd.f32 %v826, -0.4999988
        %v828 = vmul.f32 %v823, %v827
        %v829 = vadd.f32 1.0, %v828
        %v830 = vmul.f32 %v821, %v821
        %v831 = vmul.f32 %v830, -0.00019511016
        %v832 = vadd.f32 %v831, 0.008332121
        %v833 = vmul.f32 %v830, %v832
        %v834 = vadd.f32 %v833, -0.16666654
        %v835 = vmul.f32 %v830, %v834
        %v836 = vadd.f32 %v835, 1.0
        %v837 = vmul.f32 %v836, %v821
        %vm838 = vweird.f32 %v693
        %v839 = vadd.s32 %v822, 3
        %v840 = vand.u32 %v839, 3
        %vm841 = vcmp.lt.s32.totalorder %v840, 2
        %vm842 = vcmp.eq.s32.totalorder %v840, 0
        %v843 = vxor.u32 %v837, 2147483648
        %v844 = vsel %vm842, %v829, %v843
        %vm845 = vcmp.eq.s32.totalorder %v840, 2
        %v846 = vxor.u32 %v829, 2147483648
        %v847 = vsel %vm845, %v846, %v837
        %v848 = vsel %vm841, %v844, %v847
        %v849 = vsel %vm838, nan, %v848
        %v850 = vand.u32 2147483647, %v693
        %vm851 = vcmp.le.f32.partialorder %v850, 0.7853982
        %vm852 = vcmp.lt.s32.totalorder %v693, 0
        %v853 = vand.u32 %v693, 2139095040
        %v854 = vshrl.u32 %v853, 23
        %v855 = vsub.s32 %v854, 127
        %v856 = vand.u32 2147483647, %v693
        %v857 = vand.u32 %v856, 8388607
        %v858 = vor.u32 %v857, 8388608
        %v859 = vsub.s32 0, %v858
        %v860 = vadd.s32 %v855, 1
        %vm861 = vcmp.gt.s32.totalorder %v860, 0
        %v862 = vsel %vm861, %v860, 0
        %v863 = vshrl.u32 %v862, 5
        %v864 = vand.u32 %v862, 31
        %v865 = vsub.s32 32, %v864
        %v866 = vshrl.u32 683565275, %v865
        %v867 = vshll.u32 683565275, %v864
        %v868 = vshrl.u32 2475754826, %v865
        %v869 = vor.u32 %v867, %v868
        %v870 = vshll.u32 2475754826, %v864
        %v871 = vshrl.u32 2131351028, %v865
        %v872 = vor.u32 %v870, %v871
        %v873 = vshll.u32 2131351028, %v864
        %v874 = vshrl.u32 2102212464, %v865
        %v875 = vor.u32 %v873, %v874
        %v876 = vshll.u32 2102212464, %v864
        %v877 = vshrl.u32 920167782, %v865
        %v878 = vor.u32 %v876, %v877
        %v879 = vshll.u32 920167782, %v864
        %v880 = vshrl.u32 1326507024, %v865
        %v881 = vor.u32 %v879, %v880
        %vm882 = vcmp.lt.s32.totalorder %v863, 1
        %vm883 = vcmp.lt.s32.totalorder %v863, 2
        %vm884 = vcmp.lt.s32.totalorder %v863, 3
        %vm885 = vcmp.lt.s32.totalorder %v863, 4
        %v886 = vsel %vm882, %v866, %v869
        %v887 = vsel %vm885, %v875, 2102212464
        %v888 = vsel %vm884, %v872, %v887
        %v889 = vsel %vm883, %v886, %v888
        %v890 = vsel %vm882, %v869, %v872
        %v891 = vsel %vm885, %v878, 920167782
        %v892 = vsel %vm884, %v875, %v891
        %v893 = vsel %vm883, %v890, %v892
        %v894 = vsel %vm882, %v872, %v875
        %v895 = vsel %vm885, %v881, 1326507024
        %v896 = vsel %vm884, %v878, %v895
        %v897 = vsel %vm883, %v894, %v896
        %v898 = vshll.u32 %v858, 8
        %v899 = vand.u32 %v898, 65535
        %v900 = vshrl.u32 %v898, 16
        %v901 = vand.u32 %v897, 65535
        %v902 = vshrl.u32 %v897, 16
        %v903 = vmul.u32 %v899, %v901
        %v904 = vmul.u32 %v899, %v902
        %v905 = vmul.u32 %v900, %v901
        %v906 = vmul.u32 %v900, %v902
        %v907 = vshll.u32 %v904, 16
        %v908 = vshrl.u32 %v904, 16
        %v909 = vshll.u32 %v905, 16
        %v910 = vshrl.u32 %v905, 16
        %vm911 = vc.u32 %v903, %v907
        %v912 = vsel %vm911, 1, 0
        %v913 = vadd.s32 %v903, %v907
        %v914 = vadd.s32 %v906, %v912
        %vm915 = vc.u32 %v913, %v909
        %v916 = vsel %vm915, 1, 0
        %v917 = vadd.s32 %v913, %v909
        %v918 = vadd.s32 %v914, %v916
        %v919 = vadd.s32 %v918, %v908
        %v920 = vadd.s32 %v919, %v910
        %v921 = vand.u32 %v898, 65535
        %v922 = vshrl.u32 %v898, 16
        %v923 = vand.u32 %v893, 65535
        %v924 = vshrl.u32 %v893, 16
        %v925 = vmul.u32 %v921, %v923
        %v926 = vmul.u32 %v921, %v924
        %v927 = vmul.u32 %v922, %v923
        %v928 = vmul.u32 %v922, %v924
        %v929 = vshll.u32 %v926, 16
        %v930 = vshrl.u32 %v926, 16
        %v931 = vshll.u32 %v927, 16
        %v932 = vshrl.u32 %v927, 16
        %vm933 = vc.u32 %v925, %v929
        %v934 = vsel %vm933, 1, 0
        %v935 = vadd.s32 %v925, %v929
        %v936 = vadd.s32 %v928, %v934
        %vm937 = vc.u32 %v935, %v931
        %v938 = vsel %vm937, 1, 0
        %v939 = vadd.s32 %v935, %v931
        %v940 = vadd.s32 %v936, %v938
        %v941 = vadd.s32 %v940, %v930
        %v942 = vadd.s32 %v941, %v932
        %v943 = vmul.u32 %v898, %v889
        %v944 = vadd.s32 %v920, %v939
        %vm945 = vc.u32 %v920, %v939
        %v946 = vadd.s32 %v942, 1
        %v947 = vsel %vm945, %v946, %v942
        %v948 = vadd.s32 %v943, %v947
        %v949 = vadd.s32 %v948, 536870912
        %v950 = vshrl.u32 %v949, 30
        %v951 = vshll.u32 %v950, 30
        %v952 = vsub.s32 %v948, %v951
        %vm953 = vcmp.lt.s32.totalorder %v952, 0
        %v954 = vsub.s32 0, %v952
        %v955 = vsel %vm953, %v954, %v952
        %v956 = vclz %v955
        %v957 = vsub.s32 %v956, 2
        %vm958 = vcmp.gt.s32.totalorder 0, %v957
        %v959 = vsel %vm958, 0, %v957
        %v960 = vsub.s32 32, %v959
        %v961 = vshll.u32 %v952, %v959
        %v962 = vshrl.u32 %v944, %v960
        %v963 = vor.u32 %v961, %v962
        %v964 = vsub.s32 4294967266, %v959
        %v965 = vadd.s32 %v964, 127
        %v966 = vshll.u32 %v965, 23
        %v967 = vor.u32 4788187, %v966
        %v968 = vand.u32 2147483647, %v967
        %v970 = vcvt.s32.f32 %v963
        %v971 = vmul.f32 %v970, %v968
        %v972 = vxor.u32 %v971, 2147483648
        %v973 = vsel %vm852, %v972, %v971
        %v974 = vsub.s32 4, %v950
        %v975 = vsel %vm852, %v974, %v950
        %v976 = vsel %vm851, %v693, %v973
        %v977 = vsel %vm851, 0, %v975
        %v978 = vmul.f32 %v976, %v976
        %v979 = vmul.f32 %v978, -0.001358992
        %v980 = vadd.f32 %v979, 0.041655596
        %v981 = vmul.f32 %v978, %v980
        %v982 = vadd.f32 %v981, -0.4999988
        %v983 = vmul.f32 %v978, %v982
        %v984 = vadd.f32 1.0, %v983
        %v985 = vmul.f32 %v976, %v976
        %v986 = vmul.f32 %v985, -0.00019511016
        %v987 = vadd.f32 %v986, 0.008332121
        %v988 = vmul.f32 %v985, %v987
        %v989 = vadd.f32 %v988, -0.16666654
        %v990 = vmul.f32 %v985, %v989
        %v991 = vadd.f32 %v990, 1.0
        %v992 = vmul.f32 %v991, %v976
        %vm993 = vweird.f32 %v693
        %v994 = vand.u32 %v977, 3
        %vm995 = vcmp.lt.s32.totalorder %v994, 2
        %vm996 = vcmp.eq.s32.totalorder %v994, 0
        %v997 = vxor.u32 %v992, 2147483648
        %v998 = vsel %vm996, %v984, %v997
        %vm999 = vcmp.eq.s32.totalorder %v994, 2
        %v1000 = vxor.u32 %v984, 2147483648
        %v1001 = vsel %vm999, %v1000, %v992
        %v1002 = vsel %vm995, %v998, %v1001
        %v1003 = vsel %vm993, nan, %v1002
        %1004 = vmatpush.msra.mxu0 %v333
        %1005 = vmatpush.msra.mxu0 %v332
        %1006 = vmatpush.msra.mxu0 %v331
        %1007 = vmatpush.msra.mxu0 %v330
        %1008 = vmatpush.msra.mxu0 %v329
        %1009 = vmatpush.msra.mxu0 %v328
        %1010 = vmatpush.msra.mxu0 %v327
        %1011 = vmatpush.msra.mxu0 %v326
        %1012 = vmatpush.msra.mxu0 %v325
        %1013 = vmatpush.msra.mxu0 %v324
        %1014 = vmatpush.msra.mxu0 %v323
        %1015 = vmatpush.msra.mxu0 %v322
        %1016 = vmatpush.msra.mxu0 %v321
        %1017 = vmatpush.msra.mxu0 %v320
        %1018 = vmatpush.msra.mxu0 %v319
        %1019 = vmatpush.msra.mxu0 %v318
        %1020 = vmatmul.f32.gmra.mxu0 %v1003
        %v1021 = vpop.f32.mrf.mxu0
        %v1022 = vadd.f32 0.0, %v1021
        %1023 = vdwg.mxu0
        %1024 = vmatpush.msra.mxu0 %v333
        %1025 = vmatpush.msra.mxu0 %v332
        %1026 = vmatpush.msra.mxu0 %v331
        %1027 = vmatpush.msra.mxu0 %v330
        %1028 = vmatpush.msra.mxu0 %v329
        %1029 = vmatpush.msra.mxu0 %v328
        %1030 = vmatpush.msra.mxu0 %v327
        %1031 = vmatpush.msra.mxu0 %v326
        %1032 = vmatpush.msra.mxu0 %v325
        %1033 = vmatpush.msra.mxu0 %v324
        %1034 = vmatpush.msra.mxu0 %v323
        %1035 = vmatpush.msra.mxu0 %v322
        %1036 = vmatpush.msra.mxu0 %v321
        %1037 = vmatpush.msra.mxu0 %v320
        %1038 = vmatpush.msra.mxu0 %v319
        %1039 = vmatpush.msra.mxu0 %v318
        %1040 = vmatmul.f32.gmra.mxu0 %v849
        %v1041 = vpop.f32.mrf.mxu0
        %v1042 = vadd.f32 0.0, %v1041
        %1043 = vdwg.mxu0
        %v1044 = vmul.f32 %v849, %v1022
        %v1045 = vmul.f32 %v1003, %v1042
        %v1046 = vsub.f32 %v1044, %v1045
        %v1047 = vld [vmem:[%s312] sm:$0x3]
        %v1048 = vadd.f32 %v1046, %v1047
        %v1049 = vadd.f32 %v1048, %v693
        %v1050 = vmul.f32 %v1049, 0.15915494
        %v1051 = vfloor.f32 %v1050
        %v1052 = vmul.f32 %v1051, 6.2831855
        %v1053 = vsub.f32 %v1049, %v1052
        %s1054 = scalar_lea.vmem %s271, 2 [#allocation10]
        %1055 = vst [vmem:[%s1054] sm:$0x3] %v1053
        %v1056 = vand.u32 2147483647, %v1053
        %vm1057 = vcmp.le.f32.partialorder %v1056, 0.7853982
        %vm1058 = vcmp.lt.s32.totalorder %v1053, 0
        %v1059 = vand.u32 %v1053, 2139095040
        %v1060 = vshrl.u32 %v1059, 23
        %v1061 = vsub.s32 %v1060, 127
        %v1062 = vand.u32 2147483647, %v1053
        %v1063 = vand.u32 %v1062, 8388607
        %v1064 = vor.u32 %v1063, 8388608
        %v1065 = vsub.s32 0, %v1064
        %v1066 = vadd.s32 %v1061, 1
        %vm1067 = vcmp.gt.s32.totalorder %v1066, 0
        %v1068 = vsel %vm1067, %v1066, 0
        %v1069 = vshrl.u32 %v1068, 5
        %v1070 = vand.u32 %v1068, 31
        %v1071 = vsub.s32 32, %v1070
        %v1072 = vshrl.u32 683565275, %v1071
        %v1073 = vshll.u32 683565275, %v1070
        %v1074 = vshrl.u32 2475754826, %v1071
        %v1075 = vor.u32 %v1073, %v1074
        %v1076 = vshll.u32 2475754826, %v1070
        %v1077 = vshrl.u32 2131351028, %v1071
        %v1078 = vor.u32 %v1076, %v1077
        %v1079 = vshll.u32 2131351028, %v1070
        %v1080 = vshrl.u32 2102212464, %v1071
        %v1081 = vor.u32 %v1079, %v1080
        %v1082 = vshll.u32 2102212464, %v1070
        %v1083 = vshrl.u32 920167782, %v1071
        %v1084 = vor.u32 %v1082, %v1083
        %v1085 = vshll.u32 920167782, %v1070
        %v1086 = vshrl.u32 1326507024, %v1071
        %v1087 = vor.u32 %v1085, %v1086
        %vm1088 = vcmp.lt.s32.totalorder %v1069, 1
        %vm1089 = vcmp.lt.s32.totalorder %v1069, 2
        %vm1090 = vcmp.lt.s32.totalorder %v1069, 3
        %vm1091 = vcmp.lt.s32.totalorder %v1069, 4
        %v1092 = vsel %vm1088, %v1072, %v1075
        %v1093 = vsel %vm1091, %v1081, 2102212464
        %v1094 = vsel %vm1090, %v1078, %v1093
        %v1095 = vsel %vm1089, %v1092, %v1094
        %v1096 = vsel %vm1088, %v1075, %v1078
        %v1097 = vsel %vm1091, %v1084, 920167782
        %v1098 = vsel %vm1090, %v1081, %v1097
        %v1099 = vsel %vm1089, %v1096, %v1098
        %v1100 = vsel %vm1088, %v1078, %v1081
        %v1101 = vsel %vm1091, %v1087, 1326507024
        %v1102 = vsel %vm1090, %v1084, %v1101
        %v1103 = vsel %vm1089, %v1100, %v1102
        %v1104 = vshll.u32 %v1064, 8
        %v1105 = vand.u32 %v1104, 65535
        %v1106 = vshrl.u32 %v1104, 16
        %v1107 = vand.u32 %v1103, 65535
        %v1108 = vshrl.u32 %v1103, 16
        %v1109 = vmul.u32 %v1105, %v1107
        %v1110 = vmul.u32 %v1105, %v1108
        %v1111 = vmul.u32 %v1106, %v1107
        %v1112 = vmul.u32 %v1106, %v1108
        %v1113 = vshll.u32 %v1110, 16
        %v1114 = vshrl.u32 %v1110, 16
        %v1115 = vshll.u32 %v1111, 16
        %v1116 = vshrl.u32 %v1111, 16
        %vm1117 = vc.u32 %v1109, %v1113
        %v1118 = vsel %vm1117, 1, 0
        %v1119 = vadd.s32 %v1109, %v1113
        %v1120 = vadd.s32 %v1112, %v1118
        %vm1121 = vc.u32 %v1119, %v1115
        %v1122 = vsel %vm1121, 1, 0
        %v1123 = vadd.s32 %v1119, %v1115
        %v1124 = vadd.s32 %v1120, %v1122
        %v1125 = vadd.s32 %v1124, %v1114
        %v1126 = vadd.s32 %v1125, %v1116
        %v1127 = vand.u32 %v1104, 65535
        %v1128 = vshrl.u32 %v1104, 16
        %v1129 = vand.u32 %v1099, 65535
        %v1130 = vshrl.u32 %v1099, 16
        %v1131 = vmul.u32 %v1127, %v1129
        %v1132 = vmul.u32 %v1127, %v1130
        %v1133 = vmul.u32 %v1128, %v1129
        %v1134 = vmul.u32 %v1128, %v1130
        %v1135 = vshll.u32 %v1132, 16
        %v1136 = vshrl.u32 %v1132, 16
        %v1137 = vshll.u32 %v1133, 16
        %v1138 = vshrl.u32 %v1133, 16
        %vm1139 = vc.u32 %v1131, %v1135
        %v1140 = vsel %vm1139, 1, 0
        %v1141 = vadd.s32 %v1131, %v1135
        %v1142 = vadd.s32 %v1134, %v1140
        %vm1143 = vc.u32 %v1141, %v1137
        %v1144 = vsel %vm1143, 1, 0
        %v1145 = vadd.s32 %v1141, %v1137
        %v1146 = vadd.s32 %v1142, %v1144
        %v1147 = vadd.s32 %v1146, %v1136
        %v1148 = vadd.s32 %v1147, %v1138
        %v1149 = vmul.u32 %v1104, %v1095
        %v1150 = vadd.s32 %v1126, %v1145
        %vm1151 = vc.u32 %v1126, %v1145
        %v1152 = vadd.s32 %v1148, 1
        %v1153 = vsel %vm1151, %v1152, %v1148
        %v1154 = vadd.s32 %v1149, %v1153
        %v1155 = vadd.s32 %v1154, 536870912
        %v1156 = vshrl.u32 %v1155, 30
        %v1157 = vshll.u32 %v1156, 30
        %v1158 = vsub.s32 %v1154, %v1157
        %vm1159 = vcmp.lt.s32.totalorder %v1158, 0
        %v1160 = vsub.s32 0, %v1158
        %v1161 = vsel %vm1159, %v1160, %v1158
        %v1162 = vclz %v1161
        %v1163 = vsub.s32 %v1162, 2
        %vm1164 = vcmp.gt.s32.totalorder 0, %v1163
        %v1165 = vsel %vm1164, 0, %v1163
        %v1166 = vsub.s32 32, %v1165
        %v1167 = vshll.u32 %v1158, %v1165
        %v1168 = vshrl.u32 %v1150, %v1166
        %v1169 = vor.u32 %v1167, %v1168
        %v1170 = vsub.s32 4294967266, %v1165
        %v1171 = vadd.s32 %v1170, 127
        %v1172 = vshll.u32 %v1171, 23
        %v1173 = vor.u32 4788187, %v1172
        %v1174 = vand.u32 2147483647, %v1173
        %v1176 = vcvt.s32.f32 %v1169
        %v1177 = vmul.f32 %v1176, %v1174
        %v1178 = vxor.u32 %v1177, 2147483648
        %v1179 = vsel %vm1058, %v1178, %v1177
        %v1180 = vsub.s32 4, %v1156
        %v1181 = vsel %vm1058, %v1180, %v1156
        %v1182 = vsel %vm1057, %v1053, %v1179
        %v1183 = vsel %vm1057, 0, %v1181
        %v1184 = vmul.f32 %v1182, %v1182
        %v1185 = vmul.f32 %v1184, -0.001358992
        %v1186 = vadd.f32 %v1185, 0.041655596
        %v1187 = vmul.f32 %v1184, %v1186
        %v1188 = vadd.f32 %v1187, -0.4999988
        %v1189 = vmul.f32 %v1184, %v1188
        %v1190 = vadd.f32 1.0, %v1189
        %v1191 = vmul.f32 %v1182, %v1182
        %v1192 = vmul.f32 %v1191, -0.00019511016
        %v1193 = vadd.f32 %v1192, 0.008332121
        %v1194 = vmul.f32 %v1191, %v1193
        %v1195 = vadd.f32 %v1194, -0.16666654
        %v1196 = vmul.f32 %v1191, %v1195
        %v1197 = vadd.f32 %v1196, 1.0
        %v1198 = vmul.f32 %v1197, %v1182
        %vm1199 = vweird.f32 %v1053
        %v1200 = vadd.s32 %v1183, 3
        %v1201 = vand.u32 %v1200, 3
        %vm1202 = vcmp.lt.s32.totalorder %v1201, 2
        %vm1203 = vcmp.eq.s32.totalorder %v1201, 0
        %v1204 = vxor.u32 %v1198, 2147483648
        %v1205 = vsel %vm1203, %v1190, %v1204
        %vm1206 = vcmp.eq.s32.totalorder %v1201, 2
        %v1207 = vxor.u32 %v1190, 2147483648
        %v1208 = vsel %vm1206, %v1207, %v1198
        %v1209 = vsel %vm1202, %v1205, %v1208
        %v1210 = vsel %vm1199, nan, %v1209
        %v1211 = vand.u32 2147483647, %v1053
        %vm1212 = vcmp.le.f32.partialorder %v1211, 0.7853982
        %vm1213 = vcmp.lt.s32.totalorder %v1053, 0
        %v1214 = vand.u32 %v1053, 2139095040
        %v1215 = vshrl.u32 %v1214, 23
        %v1216 = vsub.s32 %v1215, 127
        %v1217 = vand.u32 2147483647, %v1053
        %v1218 = vand.u32 %v1217, 8388607
        %v1219 = vor.u32 %v1218, 8388608
        %v1220 = vsub.s32 0, %v1219
        %v1221 = vadd.s32 %v1216, 1
        %vm1222 = vcmp.gt.s32.totalorder %v1221, 0
        %v1223 = vsel %vm1222, %v1221, 0
        %v1224 = vshrl.u32 %v1223, 5
        %v1225 = vand.u32 %v1223, 31
        %v1226 = vsub.s32 32, %v1225
        %v1227 = vshrl.u32 683565275, %v1226
        %v1228 = vshll.u32 683565275, %v1225
        %v1229 = vshrl.u32 2475754826, %v1226
        %v1230 = vor.u32 %v1228, %v1229
        %v1231 = vshll.u32 2475754826, %v1225
        %v1232 = vshrl.u32 2131351028, %v1226
        %v1233 = vor.u32 %v1231, %v1232
        %v1234 = vshll.u32 2131351028, %v1225
        %v1235 = vshrl.u32 2102212464, %v1226
        %v1236 = vor.u32 %v1234, %v1235
        %v1237 = vshll.u32 2102212464, %v1225
        %v1238 = vshrl.u32 920167782, %v1226
        %v1239 = vor.u32 %v1237, %v1238
        %v1240 = vshll.u32 920167782, %v1225
        %v1241 = vshrl.u32 1326507024, %v1226
        %v1242 = vor.u32 %v1240, %v1241
        %vm1243 = vcmp.lt.s32.totalorder %v1224, 1
        %vm1244 = vcmp.lt.s32.totalorder %v1224, 2
        %vm1245 = vcmp.lt.s32.totalorder %v1224, 3
        %vm1246 = vcmp.lt.s32.totalorder %v1224, 4
        %v1247 = vsel %vm1243, %v1227, %v1230
        %v1248 = vsel %vm1246, %v1236, 2102212464
        %v1249 = vsel %vm1245, %v1233, %v1248
        %v1250 = vsel %vm1244, %v1247, %v1249
        %v1251 = vsel %vm1243, %v1230, %v1233
        %v1252 = vsel %vm1246, %v1239, 920167782
        %v1253 = vsel %vm1245, %v1236, %v1252
        %v1254 = vsel %vm1244, %v1251, %v1253
        %v1255 = vsel %vm1243, %v1233, %v1236
        %v1256 = vsel %vm1246, %v1242, 1326507024
        %v1257 = vsel %vm1245, %v1239, %v1256
        %v1258 = vsel %vm1244, %v1255, %v1257
        %v1259 = vshll.u32 %v1219, 8
        %v1260 = vand.u32 %v1259, 65535
        %v1261 = vshrl.u32 %v1259, 16
        %v1262 = vand.u32 %v1258, 65535
        %v1263 = vshrl.u32 %v1258, 16
        %v1264 = vmul.u32 %v1260, %v1262
        %v1265 = vmul.u32 %v1260, %v1263
        %v1266 = vmul.u32 %v1261, %v1262
        %v1267 = vmul.u32 %v1261, %v1263
        %v1268 = vshll.u32 %v1265, 16
        %v1269 = vshrl.u32 %v1265, 16
        %v1270 = vshll.u32 %v1266, 16
        %v1271 = vshrl.u32 %v1266, 16
        %vm1272 = vc.u32 %v1264, %v1268
        %v1273 = vsel %vm1272, 1, 0
        %v1274 = vadd.s32 %v1264, %v1268
        %v1275 = vadd.s32 %v1267, %v1273
        %vm1276 = vc.u32 %v1274, %v1270
        %v1277 = vsel %vm1276, 1, 0
        %v1278 = vadd.s32 %v1274, %v1270
        %v1279 = vadd.s32 %v1275, %v1277
        %v1280 = vadd.s32 %v1279, %v1269
        %v1281 = vadd.s32 %v1280, %v1271
        %v1282 = vand.u32 %v1259, 65535
        %v1283 = vshrl.u32 %v1259, 16
        %v1284 = vand.u32 %v1254, 65535
        %v1285 = vshrl.u32 %v1254, 16
        %v1286 = vmul.u32 %v1282, %v1284
        %v1287 = vmul.u32 %v1282, %v1285
        %v1288 = vmul.u32 %v1283, %v1284
        %v1289 = vmul.u32 %v1283, %v1285
        %v1290 = vshll.u32 %v1287, 16
        %v1291 = vshrl.u32 %v1287, 16
        %v1292 = vshll.u32 %v1288, 16
        %v1293 = vshrl.u32 %v1288, 16
        %vm1294 = vc.u32 %v1286, %v1290
        %v1295 = vsel %vm1294, 1, 0
        %v1296 = vadd.s32 %v1286, %v1290
        %v1297 = vadd.s32 %v1289, %v1295
        %vm1298 = vc.u32 %v1296, %v1292
        %v1299 = vsel %vm1298, 1, 0
        %v1300 = vadd.s32 %v1296, %v1292
        %v1301 = vadd.s32 %v1297, %v1299
        %v1302 = vadd.s32 %v1301, %v1291
        %v1303 = vadd.s32 %v1302, %v1293
        %v1304 = vmul.u32 %v1259, %v1250
        %v1305 = vadd.s32 %v1281, %v1300
        %vm1306 = vc.u32 %v1281, %v1300
        %v1307 = vadd.s32 %v1303, 1
        %v1308 = vsel %vm1306, %v1307, %v1303
        %v1309 = vadd.s32 %v1304, %v1308
        %v1310 = vadd.s32 %v1309, 536870912
        %v1311 = vshrl.u32 %v1310, 30
        %v1312 = vshll.u32 %v1311, 30
        %v1313 = vsub.s32 %v1309, %v1312
        %vm1314 = vcmp.lt.s32.totalorder %v1313, 0
        %v1315 = vsub.s32 0, %v1313
        %v1316 = vsel %vm1314, %v1315, %v1313
        %v1317 = vclz %v1316
        %v1318 = vsub.s32 %v1317, 2
        %vm1319 = vcmp.gt.s32.totalorder 0, %v1318
        %v1320 = vsel %vm1319, 0, %v1318
        %v1321 = vsub.s32 32, %v1320
        %v1322 = vshll.u32 %v1313, %v1320
        %v1323 = vshrl.u32 %v1305, %v1321
        %v1324 = vor.u32 %v1322, %v1323
        %v1325 = vsub.s32 4294967266, %v1320
        %v1326 = vadd.s32 %v1325, 127
        %v1327 = vshll.u32 %v1326, 23
        %v1328 = vor.u32 4788187, %v1327
        %v1329 = vand.u32 2147483647, %v1328
        %v1331 = vcvt.s32.f32 %v1324
        %v1332 = vmul.f32 %v1331, %v1329
        %v1333 = vxor.u32 %v1332, 2147483648
        %v1334 = vsel %vm1213, %v1333, %v1332
        %v1335 = vsub.s32 4, %v1311
        %v1336 = vsel %vm1213, %v1335, %v1311
        %v1337 = vsel %vm1212, %v1053, %v1334
        %v1338 = vsel %vm1212, 0, %v1336
        %v1339 = vmul.f32 %v1337, %v1337
        %v1340 = vmul.f32 %v1339, -0.001358992
        %v1341 = vadd.f32 %v1340, 0.041655596
        %v1342 = vmul.f32 %v1339, %v1341
        %v1343 = vadd.f32 %v1342, -0.4999988
        %v1344 = vmul.f32 %v1339, %v1343
        %v1345 = vadd.f32 1.0, %v1344
        %v1346 = vmul.f32 %v1337, %v1337
        %v1347 = vmul.f32 %v1346, -0.00019511016
        %v1348 = vadd.f32 %v1347, 0.008332121
        %v1349 = vmul.f32 %v1346, %v1348
        %v1350 = vadd.f32 %v1349, -0.16666654
        %v1351 = vmul.f32 %v1346, %v1350
        %v1352 = vadd.f32 %v1351, 1.0
        %v1353 = vmul.f32 %v1352, %v1337
        %vm1354 = vweird.f32 %v1053
        %v1355 = vand.u32 %v1338, 3
        %vm1356 = vcmp.lt.s32.totalorder %v1355, 2
        %vm1357 = vcmp.eq.s32.totalorder %v1355, 0
        %v1358 = vxor.u32 %v1353, 2147483648
        %v1359 = vsel %vm1357, %v1345, %v1358
        %vm1360 = vcmp.eq.s32.totalorder %v1355, 2
        %v1361 = vxor.u32 %v1345, 2147483648
        %v1362 = vsel %vm1360, %v1361, %v1353
        %v1363 = vsel %vm1356, %v1359, %v1362
        %v1364 = vsel %vm1354, nan, %v1363
        %1365 = vmatpush.msra.mxu0 %v333
        %1366 = vmatpush.msra.mxu0 %v332
        %1367 = vmatpush.msra.mxu0 %v331
        %1368 = vmatpush.msra.mxu0 %v330
        %1369 = vmatpush.msra.mxu0 %v329
        %1370 = vmatpush.msra.mxu0 %v328
        %1371 = vmatpush.msra.mxu0 %v327
        %1372 = vmatpush.msra.mxu0 %v326
        %1373 = vmatpush.msra.mxu0 %v325
        %1374 = vmatpush.msra.mxu0 %v324
        %1375 = vmatpush.msra.mxu0 %v323
        %1376 = vmatpush.msra.mxu0 %v322
        %1377 = vmatpush.msra.mxu0 %v321
        %1378 = vmatpush.msra.mxu0 %v320
        %1379 = vmatpush.msra.mxu0 %v319
        %1380 = vmatpush.msra.mxu0 %v318
        %1381 = vmatmul.f32.gmra.mxu0 %v1364
        %v1382 = vpop.f32.mrf.mxu0
        %v1383 = vadd.f32 0.0, %v1382
        %1384 = vdwg.mxu0
        %1385 = vmatpush.msra.mxu0 %v333
        %1386 = vmatpush.msra.mxu0 %v332
        %1387 = vmatpush.msra.mxu0 %v331
        %1388 = vmatpush.msra.mxu0 %v330
        %1389 = vmatpush.msra.mxu0 %v329
        %1390 = vmatpush.msra.mxu0 %v328
        %1391 = vmatpush.msra.mxu0 %v327
        %1392 = vmatpush.msra.mxu0 %v326
        %1393 = vmatpush.msra.mxu0 %v325
        %1394 = vmatpush.msra.mxu0 %v324
        %1395 = vmatpush.msra.mxu0 %v323
        %1396 = vmatpush.msra.mxu0 %v322
        %1397 = vmatpush.msra.mxu0 %v321
        %1398 = vmatpush.msra.mxu0 %v320
        %1399 = vmatpush.msra.mxu0 %v319
        %1400 = vmatpush.msra.mxu0 %v318
        %1401 = vmatmul.f32.gmra.mxu0 %v1210
        %v1402 = vpop.f32.mrf.mxu0
        %v1403 = vadd.f32 0.0, %v1402
        %1404 = vdwg.mxu0
        %v1405 = vmul.f32 %v1210, %v1383
        %v1406 = vmul.f32 %v1364, %v1403
        %v1407 = vsub.f32 %v1405, %v1406
        %v1408 = vld [vmem:[%s314] sm:$0x3]
        %v1409 = vadd.f32 %v1407, %v1408
        %v1410 = vadd.f32 %v1409, %v1053
        %v1411 = vmul.f32 %v1410, 0.15915494
        %v1412 = vfloor.f32 %v1411
        %v1413 = vmul.f32 %v1412, 6.2831855
        %v1414 = vsub.f32 %v1410, %v1413
        %s1415 = scalar_lea.vmem %s271, 4 [#allocation10]
        %1416 = vst [vmem:[%s1415] sm:$0x3] %v1414
        %v1417 = vand.u32 2147483647, %v1414
        %vm1418 = vcmp.le.f32.partialorder %v1417, 0.7853982
        %vm1419 = vcmp.lt.s32.totalorder %v1414, 0
        %v1420 = vand.u32 %v1414, 2139095040
        %v1421 = vshrl.u32 %v1420, 23
        %v1422 = vsub.s32 %v1421, 127
        %v1423 = vand.u32 2147483647, %v1414
        %v1424 = vand.u32 %v1423, 8388607
        %v1425 = vor.u32 %v1424, 8388608
        %v1426 = vsub.s32 0, %v1425
        %v1427 = vadd.s32 %v1422, 1
        %vm1428 = vcmp.gt.s32.totalorder %v1427, 0
        %v1429 = vsel %vm1428, %v1427, 0
        %v1430 = vshrl.u32 %v1429, 5
        %v1431 = vand.u32 %v1429, 31
        %v1432 = vsub.s32 32, %v1431
        %v1433 = vshrl.u32 683565275, %v1432
        %v1434 = vshll.u32 683565275, %v1431
        %v1435 = vshrl.u32 2475754826, %v1432
        %v1436 = vor.u32 %v1434, %v1435
        %v1437 = vshll.u32 2475754826, %v1431
        %v1438 = vshrl.u32 2131351028, %v1432
        %v1439 = vor.u32 %v1437, %v1438
        %v1440 = vshll.u32 2131351028, %v1431
        %v1441 = vshrl.u32 2102212464, %v1432
        %v1442 = vor.u32 %v1440, %v1441
        %v1443 = vshll.u32 2102212464, %v1431
        %v1444 = vshrl.u32 920167782, %v1432
        %v1445 = vor.u32 %v1443, %v1444
        %v1446 = vshll.u32 920167782, %v1431
        %v1447 = vshrl.u32 1326507024, %v1432
        %v1448 = vor.u32 %v1446, %v1447
        %vm1449 = vcmp.lt.s32.totalorder %v1430, 1
        %vm1450 = vcmp.lt.s32.totalorder %v1430, 2
        %vm1451 = vcmp.lt.s32.totalorder %v1430, 3
        %vm1452 = vcmp.lt.s32.totalorder %v1430, 4
        %v1453 = vsel %vm1449, %v1433, %v1436
        %v1454 = vsel %vm1452, %v1442, 2102212464
        %v1455 = vsel %vm1451, %v1439, %v1454
        %v1456 = vsel %vm1450, %v1453, %v1455
        %v1457 = vsel %vm1449, %v1436, %v1439
        %v1458 = vsel %vm1452, %v1445, 920167782
        %v1459 = vsel %vm1451, %v1442, %v1458
        %v1460 = vsel %vm1450, %v1457, %v1459
        %v1461 = vsel %vm1449, %v1439, %v1442
        %v1462 = vsel %vm1452, %v1448, 1326507024
        %v1463 = vsel %vm1451, %v1445, %v1462
        %v1464 = vsel %vm1450, %v1461, %v1463
        %v1465 = vshll.u32 %v1425, 8
        %v1466 = vand.u32 %v1465, 65535
        %v1467 = vshrl.u32 %v1465, 16
        %v1468 = vand.u32 %v1464, 65535
        %v1469 = vshrl.u32 %v1464, 16
        %v1470 = vmul.u32 %v1466, %v1468
        %v1471 = vmul.u32 %v1466, %v1469
        %v1472 = vmul.u32 %v1467, %v1468
        %v1473 = vmul.u32 %v1467, %v1469
        %v1474 = vshll.u32 %v1471, 16
        %v1475 = vshrl.u32 %v1471, 16
        %v1476 = vshll.u32 %v1472, 16
        %v1477 = vshrl.u32 %v1472, 16
        %vm1478 = vc.u32 %v1470, %v1474
        %v1479 = vsel %vm1478, 1, 0
        %v1480 = vadd.s32 %v1470, %v1474
        %v1481 = vadd.s32 %v1473, %v1479
        %vm1482 = vc.u32 %v1480, %v1476
        %v1483 = vsel %vm1482, 1, 0
        %v1484 = vadd.s32 %v1480, %v1476
        %v1485 = vadd.s32 %v1481, %v1483
        %v1486 = vadd.s32 %v1485, %v1475
        %v1487 = vadd.s32 %v1486, %v1477
        %v1488 = vand.u32 %v1465, 65535
        %v1489 = vshrl.u32 %v1465, 16
        %v1490 = vand.u32 %v1460, 65535
        %v1491 = vshrl.u32 %v1460, 16
        %v1492 = vmul.u32 %v1488, %v1490
        %v1493 = vmul.u32 %v1488, %v1491
        %v1494 = vmul.u32 %v1489, %v1490
        %v1495 = vmul.u32 %v1489, %v1491
        %v1496 = vshll.u32 %v1493, 16
        %v1497 = vshrl.u32 %v1493, 16
        %v1498 = vshll.u32 %v1494, 16
        %v1499 = vshrl.u32 %v1494, 16
        %vm1500 = vc.u32 %v1492, %v1496
        %v1501 = vsel %vm1500, 1, 0
        %v1502 = vadd.s32 %v1492, %v1496
        %v1503 = vadd.s32 %v1495, %v1501
        %vm1504 = vc.u32 %v1502, %v1498
        %v1505 = vsel %vm1504, 1, 0
        %v1506 = vadd.s32 %v1502, %v1498
        %v1507 = vadd.s32 %v1503, %v1505
        %v1508 = vadd.s32 %v1507, %v1497
        %v1509 = vadd.s32 %v1508, %v1499
        %v1510 = vmul.u32 %v1465, %v1456
        %v1511 = vadd.s32 %v1487, %v1506
        %vm1512 = vc.u32 %v1487, %v1506
        %v1513 = vadd.s32 %v1509, 1
        %v1514 = vsel %vm1512, %v1513, %v1509
        %v1515 = vadd.s32 %v1510, %v1514
        %v1516 = vadd.s32 %v1515, 536870912
        %v1517 = vshrl.u32 %v1516, 30
        %v1518 = vshll.u32 %v1517, 30
        %v1519 = vsub.s32 %v1515, %v1518
        %vm1520 = vcmp.lt.s32.totalorder %v1519, 0
        %v1521 = vsub.s32 0, %v1519
        %v1522 = vsel %vm1520, %v1521, %v1519
        %v1523 = vclz %v1522
        %v1524 = vsub.s32 %v1523, 2
        %vm1525 = vcmp.gt.s32.totalorder 0, %v1524
        %v1526 = vsel %vm1525, 0, %v1524
        %v1527 = vsub.s32 32, %v1526
        %v1528 = vshll.u32 %v1519, %v1526
        %v1529 = vshrl.u32 %v1511, %v1527
        %v1530 = vor.u32 %v1528, %v1529
        %v1531 = vsub.s32 4294967266, %v1526
        %v1532 = vadd.s32 %v1531, 127
        %v1533 = vshll.u32 %v1532, 23
        %v1534 = vor.u32 4788187, %v1533
        %v1535 = vand.u32 2147483647, %v1534
        %v1537 = vcvt.s32.f32 %v1530
        %v1538 = vmul.f32 %v1537, %v1535
        %v1539 = vxor.u32 %v1538, 2147483648
        %v1540 = vsel %vm1419, %v1539, %v1538
        %v1541 = vsub.s32 4, %v1517
        %v1542 = vsel %vm1419, %v1541, %v1517
        %v1543 = vsel %vm1418, %v1414, %v1540
        %v1544 = vsel %vm1418, 0, %v1542
        %v1545 = vmul.f32 %v1543, %v1543
        %v1546 = vmul.f32 %v1545, -0.001358992
        %v1547 = vadd.f32 %v1546, 0.041655596
        %v1548 = vmul.f32 %v1545, %v1547
        %v1549 = vadd.f32 %v1548, -0.4999988
        %v1550 = vmul.f32 %v1545, %v1549
        %v1551 = vadd.f32 1.0, %v1550
        %v1552 = vmul.f32 %v1543, %v1543
        %v1553 = vmul.f32 %v1552, -0.00019511016
        %v1554 = vadd.f32 %v1553, 0.008332121
        %v1555 = vmul.f32 %v1552, %v1554
        %v1556 = vadd.f32 %v1555, -0.16666654
        %v1557 = vmul.f32 %v1552, %v1556
        %v1558 = vadd.f32 %v1557, 1.0
        %v1559 = vmul.f32 %v1558, %v1543
        %vm1560 = vweird.f32 %v1414
        %v1561 = vadd.s32 %v1544, 3
        %v1562 = vand.u32 %v1561, 3
        %vm1563 = vcmp.lt.s32.totalorder %v1562, 2
        %vm1564 = vcmp.eq.s32.totalorder %v1562, 0
        %v1565 = vxor.u32 %v1559, 2147483648
        %v1566 = vsel %vm1564, %v1551, %v1565
        %vm1567 = vcmp.eq.s32.totalorder %v1562, 2
        %v1568 = vxor.u32 %v1551, 2147483648
        %v1569 = vsel %vm1567, %v1568, %v1559
        %v1570 = vsel %vm1563, %v1566, %v1569
        %v1571 = vsel %vm1560, nan, %v1570
        %v1572 = vand.u32 2147483647, %v1414
        %vm1573 = vcmp.le.f32.partialorder %v1572, 0.7853982
        %vm1574 = vcmp.lt.s32.totalorder %v1414, 0
        %v1575 = vand.u32 %v1414, 2139095040
        %v1576 = vshrl.u32 %v1575, 23
        %v1577 = vsub.s32 %v1576, 127
        %v1578 = vand.u32 2147483647, %v1414
        %v1579 = vand.u32 %v1578, 8388607
        %v1580 = vor.u32 %v1579, 8388608
        %v1581 = vsub.s32 0, %v1580
        %v1582 = vadd.s32 %v1577, 1
        %vm1583 = vcmp.gt.s32.totalorder %v1582, 0
        %v1584 = vsel %vm1583, %v1582, 0
        %v1585 = vshrl.u32 %v1584, 5
        %v1586 = vand.u32 %v1584, 31
        %v1587 = vsub.s32 32, %v1586
        %v1588 = vshrl.u32 683565275, %v1587
        %v1589 = vshll.u32 683565275, %v1586
        %v1590 = vshrl.u32 2475754826, %v1587
        %v1591 = vor.u32 %v1589, %v1590
        %v1592 = vshll.u32 2475754826, %v1586
        %v1593 = vshrl.u32 2131351028, %v1587
        %v1594 = vor.u32 %v1592, %v1593
        %v1595 = vshll.u32 2131351028, %v1586
        %v1596 = vshrl.u32 2102212464, %v1587
        %v1597 = vor.u32 %v1595, %v1596
        %v1598 = vshll.u32 2102212464, %v1586
        %v1599 = vshrl.u32 920167782, %v1587
        %v1600 = vor.u32 %v1598, %v1599
        %v1601 = vshll.u32 920167782, %v1586
        %v1602 = vshrl.u32 1326507024, %v1587
        %v1603 = vor.u32 %v1601, %v1602
        %vm1604 = vcmp.lt.s32.totalorder %v1585, 1
        %vm1605 = vcmp.lt.s32.totalorder %v1585, 2
        %vm1606 = vcmp.lt.s32.totalorder %v1585, 3
        %vm1607 = vcmp.lt.s32.totalorder %v1585, 4
        %v1608 = vsel %vm1604, %v1588, %v1591
        %v1609 = vsel %vm1607, %v1597, 2102212464
        %v1610 = vsel %vm1606, %v1594, %v1609
        %v1611 = vsel %vm1605, %v1608, %v1610
        %v1612 = vsel %vm1604, %v1591, %v1594
        %v1613 = vsel %vm1607, %v1600, 920167782
        %v1614 = vsel %vm1606, %v1597, %v1613
        %v1615 = vsel %vm1605, %v1612, %v1614
        %v1616 = vsel %vm1604, %v1594, %v1597
        %v1617 = vsel %vm1607, %v1603, 1326507024
        %v1618 = vsel %vm1606, %v1600, %v1617
        %v1619 = vsel %vm1605, %v1616, %v1618
        %v1620 = vshll.u32 %v1580, 8
        %v1621 = vand.u32 %v1620, 65535
        %v1622 = vshrl.u32 %v1620, 16
        %v1623 = vand.u32 %v1619, 65535
        %v1624 = vshrl.u32 %v1619, 16
        %v1625 = vmul.u32 %v1621, %v1623
        %v1626 = vmul.u32 %v1621, %v1624
        %v1627 = vmul.u32 %v1622, %v1623
        %v1628 = vmul.u32 %v1622, %v1624
        %v1629 = vshll.u32 %v1626, 16
        %v1630 = vshrl.u32 %v1626, 16
        %v1631 = vshll.u32 %v1627, 16
        %v1632 = vshrl.u32 %v1627, 16
        %vm1633 = vc.u32 %v1625, %v1629
        %v1634 = vsel %vm1633, 1, 0
        %v1635 = vadd.s32 %v1625, %v1629
        %v1636 = vadd.s32 %v1628, %v1634
        %vm1637 = vc.u32 %v1635, %v1631
        %v1638 = vsel %vm1637, 1, 0
        %v1639 = vadd.s32 %v1635, %v1631
        %v1640 = vadd.s32 %v1636, %v1638
        %v1641 = vadd.s32 %v1640, %v1630
        %v1642 = vadd.s32 %v1641, %v1632
        %v1643 = vand.u32 %v1620, 65535
        %v1644 = vshrl.u32 %v1620, 16
        %v1645 = vand.u32 %v1615, 65535
        %v1646 = vshrl.u32 %v1615, 16
        %v1647 = vmul.u32 %v1643, %v1645
        %v1648 = vmul.u32 %v1643, %v1646
        %v1649 = vmul.u32 %v1644, %v1645
        %v1650 = vmul.u32 %v1644, %v1646
        %v1651 = vshll.u32 %v1648, 16
        %v1652 = vshrl.u32 %v1648, 16
        %v1653 = vshll.u32 %v1649, 16
        %v1654 = vshrl.u32 %v1649, 16
        %vm1655 = vc.u32 %v1647, %v1651
        %v1656 = vsel %vm1655, 1, 0
        %v1657 = vadd.s32 %v1647, %v1651
        %v1658 = vadd.s32 %v1650, %v1656
        %vm1659 = vc.u32 %v1657, %v1653
        %v1660 = vsel %vm1659, 1, 0
        %v1661 = vadd.s32 %v1657, %v1653
        %v1662 = vadd.s32 %v1658, %v1660
        %v1663 = vadd.s32 %v1662, %v1652
        %v1664 = vadd.s32 %v1663, %v1654
        %v1665 = vmul.u32 %v1620, %v1611
        %v1666 = vadd.s32 %v1642, %v1661
        %vm1667 = vc.u32 %v1642, %v1661
        %v1668 = vadd.s32 %v1664, 1
        %v1669 = vsel %vm1667, %v1668, %v1664
        %v1670 = vadd.s32 %v1665, %v1669
        %v1671 = vadd.s32 %v1670, 536870912
        %v1672 = vshrl.u32 %v1671, 30
        %v1673 = vshll.u32 %v1672, 30
        %v1674 = vsub.s32 %v1670, %v1673
        %vm1675 = vcmp.lt.s32.totalorder %v1674, 0
        %v1676 = vsub.s32 0, %v1674
        %v1677 = vsel %vm1675, %v1676, %v1674
        %v1678 = vclz %v1677
        %v1679 = vsub.s32 %v1678, 2
        %vm1680 = vcmp.gt.s32.totalorder 0, %v1679
        %v1681 = vsel %vm1680, 0, %v1679
        %v1682 = vsub.s32 32, %v1681
        %v1683 = vshll.u32 %v1674, %v1681
        %v1684 = vshrl.u32 %v1666, %v1682
        %v1685 = vor.u32 %v1683, %v1684
        %v1686 = vsub.s32 4294967266, %v1681
        %v1687 = vadd.s32 %v1686, 127
        %v1688 = vshll.u32 %v1687, 23
        %v1689 = vor.u32 4788187, %v1688
        %v1690 = vand.u32 2147483647, %v1689
        %v1692 = vcvt.s32.f32 %v1685
        %v1693 = vmul.f32 %v1692, %v1690
        %v1694 = vxor.u32 %v1693, 2147483648
        %v1695 = vsel %vm1574, %v1694, %v1693
        %v1696 = vsub.s32 4, %v1672
        %v1697 = vsel %vm1574, %v1696, %v1672
        %v1698 = vsel %vm1573, %v1414, %v1695
        %v1699 = vsel %vm1573, 0, %v1697
        %v1700 = vmul.f32 %v1698, %v1698
        %v1701 = vmul.f32 %v1700, -0.001358992
        %v1702 = vadd.f32 %v1701, 0.041655596
        %v1703 = vmul.f32 %v1700, %v1702
        %v1704 = vadd.f32 %v1703, -0.4999988
        %v1705 = vmul.f32 %v1700, %v1704
        %v1706 = vadd.f32 1.0, %v1705
        %v1707 = vmul.f32 %v1698, %v1698
        %v1708 = vmul.f32 %v1707, -0.00019511016
        %v1709 = vadd.f32 %v1708, 0.008332121
        %v1710 = vmul.f32 %v1707, %v1709
        %v1711 = vadd.f32 %v1710, -0.16666654
        %v1712 = vmul.f32 %v1707, %v1711
        %v1713 = vadd.f32 %v1712, 1.0
        %v1714 = vmul.f32 %v1713, %v1698
        %vm1715 = vweird.f32 %v1414
        %v1716 = vand.u32 %v1699, 3
        %vm1717 = vcmp.lt.s32.totalorder %v1716, 2
        %vm1718 = vcmp.eq.s32.totalorder %v1716, 0
        %v1719 = vxor.u32 %v1714, 2147483648
        %v1720 = vsel %vm1718, %v1706, %v1719
        %vm1721 = vcmp.eq.s32.totalorder %v1716, 2
        %v1722 = vxor.u32 %v1706, 2147483648
        %v1723 = vsel %vm1721, %v1722, %v1714
        %v1724 = vsel %vm1717, %v1720, %v1723
        %v1725 = vsel %vm1715, nan, %v1724
        %1726 = vmatpush.msra.mxu0 %v333
        %1727 = vmatpush.msra.mxu0 %v332
        %1728 = vmatpush.msra.mxu0 %v331
        %1729 = vmatpush.msra.mxu0 %v330
        %1730 = vmatpush.msra.mxu0 %v329
        %1731 = vmatpush.msra.mxu0 %v328
        %1732 = vmatpush.msra.mxu0 %v327
        %1733 = vmatpush.msra.mxu0 %v326
        %1734 = vmatpush.msra.mxu0 %v325
        %1735 = vmatpush.msra.mxu0 %v324
        %1736 = vmatpush.msra.mxu0 %v323
        %1737 = vmatpush.msra.mxu0 %v322
        %1738 = vmatpush.msra.mxu0 %v321
        %1739 = vmatpush.msra.mxu0 %v320
        %1740 = vmatpush.msra.mxu0 %v319
        %1741 = vmatpush.msra.mxu0 %v318
        %1742 = vmatmul.f32.gmra.mxu0 %v1725
        %v1743 = vpop.f32.mrf.mxu0
        %v1744 = vadd.f32 0.0, %v1743
        %1745 = vdwg.mxu0
        %1746 = vmatpush.msra.mxu0 %v333
        %1747 = vmatpush.msra.mxu0 %v332
        %1748 = vmatpush.msra.mxu0 %v331
        %1749 = vmatpush.msra.mxu0 %v330
        %1750 = vmatpush.msra.mxu0 %v329
        %1751 = vmatpush.msra.mxu0 %v328
        %1752 = vmatpush.msra.mxu0 %v327
        %1753 = vmatpush.msra.mxu0 %v326
        %1754 = vmatpush.msra.mxu0 %v325
        %1755 = vmatpush.msra.mxu0 %v324
        %1756 = vmatpush.msra.mxu0 %v323
        %1757 = vmatpush.msra.mxu0 %v322
        %1758 = vmatpush.msra.mxu0 %v321
        %1759 = vmatpush.msra.mxu0 %v320
        %1760 = vmatpush.msra.mxu0 %v319
        %1761 = vmatpush.msra.mxu0 %v318
        %1762 = vmatmul.f32.gmra.mxu0 %v1571
        %v1763 = vpop.f32.mrf.mxu0
        %v1764 = vadd.f32 0.0, %v1763
        %1765 = vdwg.mxu0
        %v1766 = vmul.f32 %v1571, %v1744
        %v1767 = vmul.f32 %v1725, %v1764
        %v1768 = vsub.f32 %v1766, %v1767
        %v1769 = vld [vmem:[%s316] sm:$0x3]
        %v1770 = vadd.f32 %v1768, %v1769
        %v1771 = vadd.f32 %v1770, %v1414
        %v1772 = vmul.f32 %v1771, 0.15915494
        %v1773 = vfloor.f32 %v1772
        %v1774 = vmul.f32 %v1773, 6.2831855
        %v1775 = vsub.f32 %v1771, %v1774
        %s1776 = scalar_lea.vmem %s271, 6 [#allocation10]
        %1777 = vst [vmem:[%s1776] sm:$0x3] %v1775
        %1778 = vst [vmem:[#allocation2] sm:$0x3] %v1775
        %p1779 = scmp.eq.s32.totalorder %s25, 1
        // Predicated region
        $region53: #{tpu_custom_call.1} parent=35 // pred_check
          %p1780 = pneg %p1779
        $region54: #{tpu_custom_call.1} parent=35 // pred_check_branch
          %1782 = sbr.rel (%p1780) target = $region56
        $region55: #{tpu_custom_call.1} parent=35 // pred_region
          %1783 = vst [vmem:[#allocation11] sm:$0x3] %v1775
        $region56: #{tpu_custom_call.1} parent=35 // pred_fallthru
          _
        %s1784 = sand.u32 %s122, 1
        %s1785 = scalar_lea.sflag [#allocation6], %s1784
        %s1786 = sand.u32 %s122, 1
        %s1787 = smul.addr %s1786, 8
        %s1788 = scalar_lea.vmem [#allocation10], %s1787
        // Predicated region
        $region57: #{tpu_custom_call.1} parent=35 // pred_check
          %p1789 = pneg %p132
        $region58: #{tpu_custom_call.1} parent=35 // pred_check_branch
          %1791 = sbr.rel (%p1789) target = $region60
        $region59: #{tpu_custom_call.1} parent=35 // pred_region
          %s1792 = smul.u32 4, %s25
          %1794 = vsyncadd %s1785, 0
          %s1795 = smul.addr %s1792, 2
          %s1796 = scalar_lea.hbm %s4, %s1795
          %s1797 = sshll.u32 %s1788, 4
          %s1798 = int_to_ptr.vmem [resolvable:$true] %s1797
          %s1799 = sshll.u32 %s1796, 4
          %s1800 = int_to_ptr.hbm [resolvable:$true] %s1799
          %1805 = dma.vmem_to_hbm [thread:$0]  %s1798, 128, %s1800, %s1785, 32, 32, 2
        $region60: #{tpu_custom_call.1} parent=35 // pred_fallthru
          _
        // Predicated region
        $region61: #{tpu_custom_call.1} parent=35 // pred_check
          %p1806 = pneg %p153
        $region62: #{tpu_custom_call.1} parent=35 // pred_check_branch
          %1808 = sbr.rel (%p1806) target = $region64
        $region63: #{tpu_custom_call.1} parent=35 // pred_region
          %1810 = vsyncadd [#allocation12], 0
          %s1812 = sshll.u32 [#allocation11], 4
          %s1813 = int_to_ptr.vmem [resolvable:$true] %s1812
          %s1814 = sshll.u32 %s5, 4
          %s1815 = int_to_ptr.hbm [resolvable:$true] %s1814
          %1817 = dma.vmem_to_hbm [thread:$0]  %s1813, 32, %s1815, [#allocation12]
        $region64: #{tpu_custom_call.1} parent=35 // pred_fallthru
          _
        // Predicated region
        $region65: #{tpu_custom_call.1} parent=35 // pred_check
          %p1818 = pneg %p153
        $region66: #{tpu_custom_call.1} parent=35 // pred_check_branch
          %1820 = sbr.rel (%p1818) target = $region68
        $region67: #{tpu_custom_call.1} parent=35 // pred_region
          %1822 = dma.done [#allocation12], 32
        $region68: #{tpu_custom_call.1} parent=35 // pred_fallthru
          _
      $region36: #{tpu_custom_call.1} parent=5 // pred_fallthru
        _
      %p1823 = scmp.le.s32.totalorder 2, %s20
      // Predicated region
      $region69: #{tpu_custom_call.1} parent=5 // pred_check
        %p1824 = pneg %p1823
      $region70: #{tpu_custom_call.1} parent=5 // pred_check_branch
        %1826 = sbr.rel (%p1824) target = $region72
      $region71: #{tpu_custom_call.1} parent=5 // pred_region
        %s1827 = ssub.s32 %s20, 2
        // Predicated region
        $region73: #{tpu_custom_call.1} parent=71 // pred_check
          %p1828 = pneg %p138
        $region74: #{tpu_custom_call.1} parent=71 // pred_check_branch
          %1830 = sbr.rel (%p1828) target = $region76
        $region75: #{tpu_custom_call.1} parent=71 // pred_region
          %s1831 = sand.u32 %s123, 1
          %s1832 = scalar_lea.sflag [#allocation6], %s1831
          %s1833 = sand.u32 %s123, 1
          %s1834 = smul.addr %s1833, 8
          %s1835 = scalar_lea.vmem [#allocation10], %s1834
          %1837 = dma.done %s1832, 128
        $region76: #{tpu_custom_call.1} parent=71 // pred_fallthru
          _
      $region72: #{tpu_custom_call.1} parent=5 // pred_fallthru
        _
    $region6: #{tpu_custom_call.1} parent=1 // loop_footer
      %s24 = sadd.s32 1, %s20
    $region7: #{tpu_custom_call.1} parent=1 // loop_footer_branch
      %19 = sbr.rel target = $region3
    $region8: #{tpu_custom_call.1} parent=1 // loop_exit
      _
    %1838 = vsyncpa [#allocation5], 1
    %s1839 = scalar_lea.sflag [#allocation5], 1
    %1840 = vsyncpa %s1839, 1
    %1841 = vsyncpa [#allocation8], 1
    %1842 = vsyncpa [#allocation6], 1
    %s1843 = scalar_lea.sflag [#allocation6], 1
    %1844 = vsyncpa %s1843, 1
    %1845 = vsyncpa [#allocation12], 1

</llo_original>
